<compile_context>
chip_gen: v7x
topology: tpu7x:2x2x1
jax: 0.10.0
libtpu: 0.0.40
codegen_flags: <defaults>
</compile_context>

<pallas_src>
import jax
import jax.numpy as jnp
from jax.experimental import pallas as pl
from jax.experimental.pallas import tpu as pltpu

# ---------------- model sizes (MLP arch) ----------------
B = 32                        # batch
IN_C, IN_H, IN_W = 4, 4, 4    # args.input_size -> dim_x = 64
DIM_X = IN_C * IN_H * IN_W    # 64
DIMS_X2H = (128, 64)          # encoder hidden dims; q_nn_output_dim = 64
DIMS_Z2H = (64, 128)          # decoder hidden dims
DIM_Z = 8                     # args.dim_z
NUM_FLOWS = 2                 # args.num_flows
TB = 16                       # batch tile -> grid = (2,)
LANES = 128

# lane layout of the fused head output / packed output slab / input slab
U_OFF = 0                              # amor_u  : lanes [0,16)
W_OFF = NUM_FLOWS * DIM_Z              # amor_w  : lanes [16,32)
B_OFF = 2 * NUM_FLOWS * DIM_Z          # amor_b  : lanes [32,34)
MU_OFF = 64                            # q_mean  : lanes [64,72)
VAR_OFF = MU_OFF + DIM_Z               # q_var   : lanes [72,80)
Z0_OFF = VAR_OFF + DIM_Z               # z_0     : lanes [80,88)   (output only)
ZK_OFF = Z0_OFF + DIM_Z                # z_K     : lanes [88,96)   (output only)
LDJ_OFF = ZK_OFF + DIM_Z               # log_det : lane  96        (output only)
EPS_OFF = 64                           # eps position inside input slab

N_WBLK = 6
W_ROWS = N_WBLK * LANES                # 768 packed weight rows

assert DIM_X <= MU_OFF and DIM_X <= EPS_OFF and EPS_OFF + DIM_Z <= LANES
assert B_OFF + NUM_FLOWS <= MU_OFF and LDJ_OFF < LANES
assert DIMS_X2H[0] <= LANES and DIMS_X2H[1] <= LANES
assert DIMS_Z2H[0] <= LANES and DIMS_Z2H[1] <= LANES
assert B % TB == 0


def _softplus(x):
    # numerically-stable softplus (matches nn.Softplus, beta=1)
    return jnp.maximum(x, 0.0) + jnp.log1p(jnp.exp(-jnp.abs(x)))


def planar_vae_kernel(xe_ref, w_ref, b_ref, out_ref):
    f32 = jnp.float32
    bf16 = jnp.bfloat16

    slab = xe_ref[...]                  # (TB,128) f32: [x | eps | 0-pad]
    bias = b_ref[...]                   # (8,128)  f32
    tb = slab.shape[0]

    def dense(act, blk, brow, relu=False):
        # bf16 operands on the MXU, f32 accumulation, f32 bias add.
        y = jnp.dot(act.astype(bf16), w_ref[blk * LANES:(blk + 1) * LANES, :],
                    preferred_element_type=f32) + bias[brow:brow + 1, :]
        return jnp.maximum(y, 0.0) if relu else y

    # ---------------- encoder q_nn (Linear+ReLU x2) ----------------
    # weight rows >= DIM_X are zero, so the eps/pad lanes of the slab are inert.
    h = dense(slab, 0, 0, relu=True)                    # (TB,128)
    h = dense(h, 1, 1, relu=True)                       # (TB,128), lanes>=64 are 0

    # ---------------- fused heads: q_mean | q_var | amor_u | amor_w | amor_b ----
    head = dense(h, 2, 2)                               # (TB,128)
    sp = _softplus(head)                                # one full-width EUP pass

    u_all = head[:, U_OFF:U_OFF + NUM_FLOWS * DIM_Z]
    w_all = head[:, W_OFF:W_OFF + NUM_FLOWS * DIM_Z]
    b_all = head[:, B_OFF:B_OFF + NUM_FLOWS]
    zmu = head[:, MU_OFF:MU_OFF + DIM_Z]
    zvar = sp[:, VAR_OFF:VAR_OFF + DIM_Z]
    eps = slab[:, EPS_OFF:EPS_OFF + DIM_Z]

    # ---------------- reparameterize: z0 = mu + sqrt(var) * eps ----------------
    z0 = zmu + jnp.sqrt(zvar) * eps
    z = z0
    ldj = jnp.zeros((tb, 1), f32)

    # ---------------- planar flows ----------------
    # u_hat, w.w, w.u_hat do not depend on z -> hoist them out of the serial chain.
    hoisted = []
    for k in range(NUM_FLOWS):
        uk = u_all[:, k * DIM_Z:(k + 1) * DIM_Z]
        wk = w_all[:, k * DIM_Z:(k + 1) * DIM_Z]
        bk = b_all[:, k:k + 1]
        uw = jnp.sum(wk * uk, axis=-1, keepdims=True)
        m_uw = -1.0 + _softplus(uw)
        w_norm_sq = jnp.sum(wk * wk, axis=-1, keepdims=True)
        # TODO(synk): reference Planar flow divides by ||w||^2 with no epsilon.
        u_hat = uk + (m_uw - uw) * wk / w_norm_sq
        wu_hat = jnp.sum(wk * u_hat, axis=-1, keepdims=True)
        hoisted.append((u_hat, wk, bk, wu_hat))

    for u_hat, wk, bk, wu_hat in hoisted:
        wzb = jnp.sum(wk * z, axis=-1, keepdims=True) + bk
        t = jnp.tanh(wzb)
        z = z + u_hat * t
        ldj = ldj + jnp.log(jnp.abs(1.0 + (1.0 - t * t) * wu_hat))

    # -------- lane placement of z0 / z_K into the 128-wide output slab --------
    def placement(offset):
        r = jax.lax.broadcasted_iota(jnp.int32, (DIM_Z, LANES), 0)
        c = jax.lax.broadcasted_iota(jnp.int32, (DIM_Z, LANES), 1)
        return (c == r + offset).astype(f32)

    z0_p = jnp.dot(z0, placement(Z0_OFF), preferred_element_type=f32)  # lanes 80:88
    zk_p = jnp.dot(z, placement(ZK_OFF), preferred_element_type=f32)   # lanes 88:96

    # ---------------- decoder p_nn (Linear+ReLU x2) + p_mean ----------------
    # decoder block 3 has its nonzero rows at [ZK_OFF, ZK_OFF+DIM_Z), so zk_p
    # (already lane-placed for the output) is reused directly as the input.
    d = dense(zk_p, 3, 3, relu=True)                    # (TB,128), lanes>=64 are 0
    d = dense(d, 4, 4, relu=True)                       # (TB,128)
    xfull = dense(d, 5, 5)                              # x_mean in lanes 0:64, 0 elsewhere

    # ---------------- pack everything into one lane-dense store ----------------
    col = jax.lax.broadcasted_iota(jnp.int32, (tb, LANES), 1)
    muvar = jnp.where((col >= MU_OFF) & (col < MU_OFF + DIM_Z), head,
                      jnp.where((col >= VAR_OFF) & (col < VAR_OFF + DIM_Z), sp, 0.0))
    ldj_fw = jnp.where(col >= LDJ_OFF, jnp.broadcast_to(ldj, (tb, LANES)), 0.0)

    # all addends have disjoint nonzero lane ranges
    out_ref[...] = xfull + muvar + z0_p + zk_p + ldj_fw


def planar_vae_forward(x, eps, w_packed, b_packed):
    """x: (B, DIM_X) f32, eps: (B, DIM_Z) f32, packed params from pack_params."""
    # lane-dense input slab: [x | eps | zero pad]
    slab = jnp.zeros((B, LANES), jnp.float32)
    slab = slab.at[:, :DIM_X].set(x)
    slab = slab.at[:, EPS_OFF:EPS_OFF + DIM_Z].set(eps)

    grid = (B // TB,)
    packed = pl.pallas_call(
        planar_vae_kernel,
        out_shape=jax.ShapeDtypeStruct((B, LANES), jnp.float32),
        grid=grid,
        in_specs=[
            pl.BlockSpec((TB, LANES), lambda i: (i, 0)),       # x/eps slab
            pl.BlockSpec((W_ROWS, LANES), lambda i: (0, 0)),   # packed weights (bf16)
            pl.BlockSpec((8, LANES), lambda i: (0, 0)),        # packed biases (f32)
        ],
        out_specs=pl.BlockSpec((TB, LANES), lambda i: (i, 0)),
        compiler_params=pltpu.CompilerParams(
            dimension_semantics=("parallel",)),
    )(slab, w_packed, b_packed)

    x_mean = packed[:, :DIM_X]
    z_mu = packed[:, MU_OFF:MU_OFF + DIM_Z]
    z_var = packed[:, VAR_OFF:VAR_OFF + DIM_Z]
    z0 = packed[:, Z0_OFF:Z0_OFF + DIM_Z]
    zk = packed[:, ZK_OFF:ZK_OFF + DIM_Z]
    ldj = packed[:, LDJ_OFF]
    # match PyTorch return: (x_mean, z_mu, z_var, log_det_j, z_0, z_K)
    return x_mean, z_mu, z_var, ldj, z0, zk


# ---------------- parameter construction / packing ----------------
def _init_linear(key, fan_in, fan_out):
    """PyTorch-style Linear init; weight stored as (fan_in, fan_out)."""
    k1, k2 = jax.random.split(key)
    bound = 1.0 / (fan_in ** 0.5)
    W = jax.random.uniform(k1, (fan_in, fan_out), jnp.float32, -bound, bound)
    b = jax.random.uniform(k2, (1, fan_out), jnp.float32, -bound, bound)
    return W, b


def make_params(key):
    keys = jax.random.split(key, 10)
    p = []
    p += _init_linear(keys[0], DIM_X, DIMS_X2H[0])              # q_nn layer 1
    p += _init_linear(keys[1], DIMS_X2H[0], DIMS_X2H[1])        # q_nn layer 2
    p += _init_linear(keys[2], DIMS_X2H[1], DIM_Z)              # q_mean
    p += _init_linear(keys[3], DIMS_X2H[1], DIM_Z)              # q_var
    p += _init_linear(keys[4], DIMS_X2H[1], NUM_FLOWS * DIM_Z)  # amor_u
    p += _init_linear(keys[5], DIMS_X2H[1], NUM_FLOWS * DIM_Z)  # amor_w
    p += _init_linear(keys[6], DIMS_X2H[1], NUM_FLOWS)          # amor_b
    p += _init_linear(keys[7], DIM_Z, DIMS_Z2H[0])              # p_nn layer 1
    p += _init_linear(keys[8], DIMS_Z2H[0], DIMS_Z2H[1])        # p_nn layer 2
    p += _init_linear(keys[9], DIMS_Z2H[1], DIM_X)              # p_mean
    return p


def pack_params(params):
    (qw1, qb1, qw2, qb2, qmw, qmb, qvw, qvb,
     auw, aub, aww, awb, abw, abb,
     pw1, pb1, pw2, pb2, pmw, pmb) = params

    def blk():
        return jnp.zeros((LANES, LANES), jnp.float32)

    w0 = blk().at[:DIM_X, :].set(qw1)                            # x -> h1 (eps rows stay 0)
    w1 = blk().at[:, :DIMS_X2H[1]].set(qw2)                      # h1 -> h2
    wh = blk()
    wh = wh.at[:DIMS_X2H[1], U_OFF:U_OFF + NUM_FLOWS * DIM_Z].set(auw)
    wh = wh.at[:DIMS_X2H[1], W_OFF:W_OFF + NUM_FLOWS * DIM_Z].set(aww)
    wh = wh.at[:DIMS_X2H[1], B_OFF:B_OFF + NUM_FLOWS].set(abw)
    wh = wh.at[:DIMS_X2H[1], MU_OFF:MU_OFF + DIM_Z].set(qmw)
    wh = wh.at[:DIMS_X2H[1], VAR_OFF:VAR_OFF + DIM_Z].set(qvw)
    w3 = blk().at[ZK_OFF:ZK_OFF + DIM_Z, :DIMS_Z2H[0]].set(pw1)  # zK lanes -> d1
    w4 = blk().at[:DIMS_Z2H[0], :].set(pw2)                      # d1 -> d2
    w5 = blk().at[:, :DIM_X].set(pmw)                            # d2 -> x_mean
    w_packed = jnp.concatenate([w0, w1, wh, w3, w4, w5], axis=0).astype(jnp.bfloat16)

    b_packed = jnp.zeros((8, LANES), jnp.float32)
    b_packed = b_packed.at[0, :].set(qb1[0])
    b_packed = b_packed.at[1, :DIMS_X2H[1]].set(qb2[0])
    b_packed = b_packed.at[2, U_OFF:U_OFF + NUM_FLOWS * DIM_Z].set(aub[0])
    b_packed = b_packed.at[2, W_OFF:W_OFF + NUM_FLOWS * DIM_Z].set(awb[0])
    b_packed = b_packed.at[2, B_OFF:B_OFF + NUM_FLOWS].set(abb[0])
    b_packed = b_packed.at[2, MU_OFF:MU_OFF + DIM_Z].set(qmb[0])
    b_packed = b_packed.at[2, VAR_OFF:VAR_OFF + DIM_Z].set(qvb[0])
    b_packed = b_packed.at[3, :DIMS_Z2H[0]].set(pb1[0])
    b_packed = b_packed.at[4, :].set(pb2[0])
    b_packed = b_packed.at[5, :DIM_X].set(pmb[0])
    return w_packed, b_packed


# ---------------- pure-JAX f32 reference (for a loose sanity check) ----------------
def reference_forward(x, eps, params):
    (qw1, qb1, qw2, qb2, qmw, qmb, qvw, qvb,
     auw, aub, aww, awb, abw, abb,
     pw1, pb1, pw2, pb2, pmw, pmb) = params
    h = jax.nn.relu(x @ qw1 + qb1)
    h = jax.nn.relu(h @ qw2 + qb2)
    zmu = h @ qmw + qmb
    zvar = jax.nn.softplus(h @ qvw + qvb)
    u = h @ auw + aub
    w = h @ aww + awb
    b = h @ abw + abb
    z0 = zmu + jnp.sqrt(zvar) * eps
    z = z0
    ldj = jnp.zeros((x.shape[0],), jnp.float32)
    for k in range(NUM_FLOWS):
        uk = u[:, k * DIM_Z:(k + 1) * DIM_Z]
        wk = w[:, k * DIM_Z:(k + 1) * DIM_Z]
        bk = b[:, k:k + 1]
        uw = jnp.sum(wk * uk, -1, keepdims=True)
        m_uw = -1.0 + jax.nn.softplus(uw)
        u_hat = uk + (m_uw - uw) * wk / jnp.sum(wk * wk, -1, keepdims=True)
        wzb = jnp.sum(wk * z, -1, keepdims=True) + bk
        t = jnp.tanh(wzb)
        z = z + u_hat * t
        ldj = ldj + jnp.log(jnp.abs(
            1.0 + (1.0 - t * t) * jnp.sum(wk * u_hat, -1, keepdims=True)))[:, 0]
    d = jax.nn.relu(z @ pw1 + pb1)
    d = jax.nn.relu(d @ pw2 + pb2)
    x_mean = d @ pmw + pmb
    return x_mean, zmu, zvar, ldj, z0, z


if __name__ == "__main__":
    key = jax.random.PRNGKey(0)
    kp, kx, ke = jax.random.split(key, 3)

    params = make_params(kp)
    w_packed, b_packed = pack_params(params)

    # NCHW input (as the PyTorch module would see) -> flattened for the MLP arch
    x_img = jax.random.normal(kx, (B, IN_C, IN_H, IN_W), jnp.float32)
    x = x_img.reshape(B, DIM_X)
    # reparameterization noise (drawn inside the module in PyTorch; explicit here)
    eps = jax.random.normal(ke, (B, DIM_Z), jnp.float32)

    outs = planar_vae_forward(x, eps, w_packed, b_packed)
    outs = jax.block_until_ready(outs)
    x_mean, z_mu, z_var, log_det_j, z0, zk = outs

    assert x_mean.shape == (B, DIM_X)
    assert z_mu.shape == (B, DIM_Z) and z_var.shape == (B, DIM_Z)
    assert log_det_j.shape == (B,)
    assert z0.shape == (B, DIM_Z) and zk.shape == (B, DIM_Z)
    assert bool(jnp.all(jnp.isfinite(x_mean)))
    assert bool(jnp.all(z_var > 0.0))
    assert bool(jnp.all(jnp.isfinite(log_det_j)))

    # loose check vs f32 reference (kernel uses bf16 matmul operands)
    ref = reference_forward(x, eps, params)
    names = ("x_mean", "z_mu", "z_var", "log_det_j", "z_0", "z_K")
    for name, got, want in zip(names, outs, ref):
        diff = float(jnp.max(jnp.abs(got - want)))
        assert diff < 5e-2, f"{name} mismatch: max|diff|={diff}"

    print("KERNEL_OK")
</pallas_src>

<mosaic_0001>
module attributes {stable_mosaic.version = 11 : i64} {
  func.func @planar_vae_kernel(%arg0: i32, %arg1: memref<16x128xf32, #tpu.memory_space<vmem>>, %arg2: memref<768x128xbf16, #tpu.memory_space<vmem>>, %arg3: memref<8x128xf32, #tpu.memory_space<vmem>>, %arg4: memref<16x128xf32, #tpu.memory_space<vmem>>) attributes {dimension_semantics = [#tpu.dimension_semantics<parallel>], iteration_bounds = array<i64: 2>, scalar_prefetch = 0 : i64, scratch_operands = 0 : i64, tpu.core_type = #tpu.core_type<tc>, window_params = [{transform_indices = @transform_0, window_bounds = array<i64: 16, 128>}, {pipeline_mode = #tpu.pipeline_mode<synchronous>, transform_indices = @transform_1, window_bounds = array<i64: 768, 128>}, {pipeline_mode = #tpu.pipeline_mode<synchronous>, transform_indices = @transform_2, window_bounds = array<i64: 8, 128>}, {transform_indices = @transform_3, window_bounds = array<i64: 16, 128>}]} {
    %c0 = arith.constant 0 : index
    %c0_0 = arith.constant 0 : index
    %0 = vector.load %arg1[%c0, %c0_0] : memref<16x128xf32, #tpu.memory_space<vmem>>, vector<16x128xf32>
    %c0_1 = arith.constant 0 : index
    %c0_2 = arith.constant 0 : index
    %1 = vector.load %arg3[%c0_1, %c0_2] : memref<8x128xf32, #tpu.memory_space<vmem>>, vector<8x128xf32>
    %2 = arith.truncf %0 : vector<16x128xf32> to vector<16x128xbf16>
    %c0_3 = arith.constant 0 : index
    %c0_4 = arith.constant 0 : index
    %3 = vector.load %arg2[%c0_3, %c0_4] : memref<768x128xbf16, #tpu.memory_space<vmem>>, vector<128x128xbf16>
    %cst = arith.constant dense<0.000000e+00> : vector<16x128xf32>
    %4 = tpu.matmul %2, %3, %cst {dimension_numbers = #tpu.dot_dimension_numbers<[1], [0], [0], [1], [0, 0, 1, 1], [], []>} : vector<16x128xbf16>, vector<128x128xbf16>, vector<16x128xf32> -> vector<16x128xf32>
    %5 = vector.extract_strided_slice %1 {offsets = [0, 0], sizes = [1, 128], strides = [1, 1]} : vector<8x128xf32> to vector<1x128xf32>
    %6 = vector.broadcast %5 : vector<1x128xf32> to vector<16x128xf32>
    %7 = arith.addf %4, %6 : vector<16x128xf32>
    %cst_5 = arith.constant 0.000000e+00 : f32
    %8 = vector.broadcast %cst_5 : f32 to vector<16x128xf32>
    %9 = arith.maximumf %7, %8 : vector<16x128xf32>
    %10 = arith.truncf %9 : vector<16x128xf32> to vector<16x128xbf16>
    %c128 = arith.constant 128 : index
    %c0_6 = arith.constant 0 : index
    %11 = vector.load %arg2[%c128, %c0_6] : memref<768x128xbf16, #tpu.memory_space<vmem>>, vector<128x128xbf16>
    %cst_7 = arith.constant dense<0.000000e+00> : vector<16x128xf32>
    %12 = tpu.matmul %10, %11, %cst_7 {dimension_numbers = #tpu.dot_dimension_numbers<[1], [0], [0], [1], [0, 0, 1, 1], [], []>} : vector<16x128xbf16>, vector<128x128xbf16>, vector<16x128xf32> -> vector<16x128xf32>
    %13 = vector.extract_strided_slice %1 {offsets = [1, 0], sizes = [1, 128], strides = [1, 1]} : vector<8x128xf32> to vector<1x128xf32>
    %14 = vector.broadcast %13 : vector<1x128xf32> to vector<16x128xf32>
    %15 = arith.addf %12, %14 : vector<16x128xf32>
    %cst_8 = arith.constant 0.000000e+00 : f32
    %16 = vector.broadcast %cst_8 : f32 to vector<16x128xf32>
    %17 = arith.maximumf %15, %16 : vector<16x128xf32>
    %18 = arith.truncf %17 : vector<16x128xf32> to vector<16x128xbf16>
    %c256 = arith.constant 256 : index
    %c0_9 = arith.constant 0 : index
    %19 = vector.load %arg2[%c256, %c0_9] : memref<768x128xbf16, #tpu.memory_space<vmem>>, vector<128x128xbf16>
    %cst_10 = arith.constant dense<0.000000e+00> : vector<16x128xf32>
    %20 = tpu.matmul %18, %19, %cst_10 {dimension_numbers = #tpu.dot_dimension_numbers<[1], [0], [0], [1], [0, 0, 1, 1], [], []>} : vector<16x128xbf16>, vector<128x128xbf16>, vector<16x128xf32> -> vector<16x128xf32>
    %21 = vector.extract_strided_slice %1 {offsets = [2, 0], sizes = [1, 128], strides = [1, 1]} : vector<8x128xf32> to vector<1x128xf32>
    %22 = vector.broadcast %21 : vector<1x128xf32> to vector<16x128xf32>
    %23 = arith.addf %20, %22 : vector<16x128xf32>
    %cst_11 = arith.constant 0.000000e+00 : f32
    %24 = vector.broadcast %cst_11 : f32 to vector<16x128xf32>
    %25 = arith.maximumf %23, %24 : vector<16x128xf32>
    %26 = math.absf %23 : vector<16x128xf32>
    %cst_12 = arith.constant 0.000000e+00 : f32
    %27 = vector.broadcast %cst_12 : f32 to vector<16x128xf32>
    %28 = arith.subf %27, %26 : vector<16x128xf32>
    %29 = math.exp %28 : vector<16x128xf32>
    %30 = math.log1p %29 : vector<16x128xf32>
    %31 = arith.addf %25, %30 : vector<16x128xf32>
    %32 = vector.extract_strided_slice %23 {offsets = [0, 0], sizes = [16, 16], strides = [1, 1]} : vector<16x128xf32> to vector<16x16xf32>
    %33 = vector.extract_strided_slice %23 {offsets = [0, 16], sizes = [16, 16], strides = [1, 1]} : vector<16x128xf32> to vector<16x16xf32>
    %34 = vector.extract_strided_slice %23 {offsets = [0, 32], sizes = [16, 2], strides = [1, 1]} : vector<16x128xf32> to vector<16x2xf32>
    %35 = vector.extract_strided_slice %23 {offsets = [0, 64], sizes = [16, 8], strides = [1, 1]} : vector<16x128xf32> to vector<16x8xf32>
    %36 = vector.extract_strided_slice %31 {offsets = [0, 72], sizes = [16, 8], strides = [1, 1]} : vector<16x128xf32> to vector<16x8xf32>
    %37 = vector.extract_strided_slice %0 {offsets = [0, 64], sizes = [16, 8], strides = [1, 1]} : vector<16x128xf32> to vector<16x8xf32>
    %38 = math.sqrt %36 : vector<16x8xf32>
    %39 = arith.mulf %38, %37 : vector<16x8xf32>
    %40 = arith.addf %35, %39 : vector<16x8xf32>
    %cst_13 = arith.constant 0.000000e+00 : f32
    %41 = vector.broadcast %cst_13 : f32 to vector<16x1xf32>
    %42 = vector.extract_strided_slice %32 {offsets = [0, 0], sizes = [16, 8], strides = [1, 1]} : vector<16x16xf32> to vector<16x8xf32>
    %43 = vector.extract_strided_slice %33 {offsets = [0, 0], sizes = [16, 8], strides = [1, 1]} : vector<16x16xf32> to vector<16x8xf32>
    %44 = vector.extract_strided_slice %34 {offsets = [0, 0], sizes = [16, 1], strides = [1, 1]} : vector<16x2xf32> to vector<16x1xf32>
    %45 = arith.mulf %43, %42 : vector<16x8xf32>
    %cst_14 = arith.constant dense<0.000000e+00> : vector<16xf32>
    %46 = vector.multi_reduction <add>, %45, %cst_14 [1] : vector<16x8xf32> to vector<16xf32>
    %47 = vector.shape_cast %46 : vector<16xf32> to vector<16x1xf32>
    %cst_15 = arith.constant 0.000000e+00 : f32
    %48 = vector.broadcast %cst_15 : f32 to vector<16x1xf32>
    %49 = arith.maximumf %47, %48 : vector<16x1xf32>
    %50 = math.absf %47 : vector<16x1xf32>
    %cst_16 = arith.constant 0.000000e+00 : f32
    %51 = vector.broadcast %cst_16 : f32 to vector<16x1xf32>
    %52 = arith.subf %51, %50 : vector<16x1xf32>
    %53 = math.exp %52 : vector<16x1xf32>
    %54 = math.log1p %53 : vector<16x1xf32>
    %55 = arith.addf %49, %54 : vector<16x1xf32>
    %cst_17 = arith.constant -1.000000e+00 : f32
    %56 = vector.broadcast %cst_17 : f32 to vector<16x1xf32>
    %57 = arith.addf %56, %55 : vector<16x1xf32>
    %58 = arith.mulf %43, %43 : vector<16x8xf32>
    %cst_18 = arith.constant dense<0.000000e+00> : vector<16xf32>
    %59 = vector.multi_reduction <add>, %58, %cst_18 [1] : vector<16x8xf32> to vector<16xf32>
    %60 = vector.shape_cast %59 : vector<16xf32> to vector<16x1xf32>
    %61 = arith.subf %57, %47 : vector<16x1xf32>
    %62 = vector.broadcast %61 : vector<16x1xf32> to vector<16x8xf32>
    %63 = arith.mulf %62, %43 : vector<16x8xf32>
    %64 = vector.broadcast %60 : vector<16x1xf32> to vector<16x8xf32>
    %65 = arith.divf %63, %64 : vector<16x8xf32>
    %66 = arith.addf %42, %65 : vector<16x8xf32>
    %67 = arith.mulf %43, %66 : vector<16x8xf32>
    %cst_19 = arith.constant dense<0.000000e+00> : vector<16xf32>
    %68 = vector.multi_reduction <add>, %67, %cst_19 [1] : vector<16x8xf32> to vector<16xf32>
    %69 = vector.shape_cast %68 : vector<16xf32> to vector<16x1xf32>
    %70 = vector.extract_strided_slice %32 {offsets = [0, 8], sizes = [16, 8], strides = [1, 1]} : vector<16x16xf32> to vector<16x8xf32>
    %71 = vector.extract_strided_slice %33 {offsets = [0, 8], sizes = [16, 8], strides = [1, 1]} : vector<16x16xf32> to vector<16x8xf32>
    %72 = vector.extract_strided_slice %34 {offsets = [0, 1], sizes = [16, 1], strides = [1, 1]} : vector<16x2xf32> to vector<16x1xf32>
    %73 = arith.mulf %71, %70 : vector<16x8xf32>
    %cst_20 = arith.constant dense<0.000000e+00> : vector<16xf32>
    %74 = vector.multi_reduction <add>, %73, %cst_20 [1] : vector<16x8xf32> to vector<16xf32>
    %75 = vector.shape_cast %74 : vector<16xf32> to vector<16x1xf32>
    %cst_21 = arith.constant 0.000000e+00 : f32
    %76 = vector.broadcast %cst_21 : f32 to vector<16x1xf32>
    %77 = arith.maximumf %75, %76 : vector<16x1xf32>
    %78 = math.absf %75 : vector<16x1xf32>
    %cst_22 = arith.constant 0.000000e+00 : f32
    %79 = vector.broadcast %cst_22 : f32 to vector<16x1xf32>
    %80 = arith.subf %79, %78 : vector<16x1xf32>
    %81 = math.exp %80 : vector<16x1xf32>
    %82 = math.log1p %81 : vector<16x1xf32>
    %83 = arith.addf %77, %82 : vector<16x1xf32>
    %cst_23 = arith.constant -1.000000e+00 : f32
    %84 = vector.broadcast %cst_23 : f32 to vector<16x1xf32>
    %85 = arith.addf %84, %83 : vector<16x1xf32>
    %86 = arith.mulf %71, %71 : vector<16x8xf32>
    %cst_24 = arith.constant dense<0.000000e+00> : vector<16xf32>
    %87 = vector.multi_reduction <add>, %86, %cst_24 [1] : vector<16x8xf32> to vector<16xf32>
    %88 = vector.shape_cast %87 : vector<16xf32> to vector<16x1xf32>
    %89 = arith.subf %85, %75 : vector<16x1xf32>
    %90 = vector.broadcast %89 : vector<16x1xf32> to vector<16x8xf32>
    %91 = arith.mulf %90, %71 : vector<16x8xf32>
    %92 = vector.broadcast %88 : vector<16x1xf32> to vector<16x8xf32>
    %93 = arith.divf %91, %92 : vector<16x8xf32>
    %94 = arith.addf %70, %93 : vector<16x8xf32>
    %95 = arith.mulf %71, %94 : vector<16x8xf32>
    %cst_25 = arith.constant dense<0.000000e+00> : vector<16xf32>
    %96 = vector.multi_reduction <add>, %95, %cst_25 [1] : vector<16x8xf32> to vector<16xf32>
    %97 = vector.shape_cast %96 : vector<16xf32> to vector<16x1xf32>
    %98 = arith.mulf %43, %40 : vector<16x8xf32>
    %cst_26 = arith.constant dense<0.000000e+00> : vector<16xf32>
    %99 = vector.multi_reduction <add>, %98, %cst_26 [1] : vector<16x8xf32> to vector<16xf32>
    %100 = vector.shape_cast %99 : vector<16xf32> to vector<16x1xf32>
    %101 = arith.addf %100, %44 : vector<16x1xf32>
    %102 = math.tanh %101 : vector<16x1xf32>
    %103 = vector.broadcast %102 : vector<16x1xf32> to vector<16x8xf32>
    %104 = arith.mulf %66, %103 : vector<16x8xf32>
    %105 = arith.addf %40, %104 : vector<16x8xf32>
    %106 = arith.mulf %102, %102 : vector<16x1xf32>
    %cst_27 = arith.constant 1.000000e+00 : f32
    %107 = vector.broadcast %cst_27 : f32 to vector<16x1xf32>
    %108 = arith.subf %107, %106 : vector<16x1xf32>
    %109 = arith.mulf %108, %69 : vector<16x1xf32>
    %cst_28 = arith.constant 1.000000e+00 : f32
    %110 = vector.broadcast %cst_28 : f32 to vector<16x1xf32>
    %111 = arith.addf %110, %109 : vector<16x1xf32>
    %112 = math.absf %111 : vector<16x1xf32>
    %113 = math.log %112 : vector<16x1xf32>
    %114 = arith.addf %41, %113 : vector<16x1xf32>
    %115 = arith.mulf %71, %105 : vector<16x8xf32>
    %cst_29 = arith.constant dense<0.000000e+00> : vector<16xf32>
    %116 = vector.multi_reduction <add>, %115, %cst_29 [1] : vector<16x8xf32> to vector<16xf32>
    %117 = vector.shape_cast %116 : vector<16xf32> to vector<16x1xf32>
    %118 = arith.addf %117, %72 : vector<16x1xf32>
    %119 = math.tanh %118 : vector<16x1xf32>
    %120 = vector.broadcast %119 : vector<16x1xf32> to vector<16x8xf32>
    %121 = arith.mulf %94, %120 : vector<16x8xf32>
    %122 = arith.addf %105, %121 : vector<16x8xf32>
    %123 = arith.mulf %119, %119 : vector<16x1xf32>
    %cst_30 = arith.constant 1.000000e+00 : f32
    %124 = vector.broadcast %cst_30 : f32 to vector<16x1xf32>
    %125 = arith.subf %124, %123 : vector<16x1xf32>
    %126 = arith.mulf %125, %97 : vector<16x1xf32>
    %cst_31 = arith.constant 1.000000e+00 : f32
    %127 = vector.broadcast %cst_31 : f32 to vector<16x1xf32>
    %128 = arith.addf %127, %126 : vector<16x1xf32>
    %129 = math.absf %128 : vector<16x1xf32>
    %130 = math.log %129 : vector<16x1xf32>
    %131 = arith.addf %114, %130 : vector<16x1xf32>
    %132 = tpu.iota {dimensions = array<i32: 0>} : vector<8x128xi32>
    %133 = tpu.iota {dimensions = array<i32: 1>} : vector<8x128xi32>
    %c80_i32 = arith.constant 80 : i32
    %134 = vector.broadcast %c80_i32 : i32 to vector<8x128xi32>
    %135 = arith.addi %132, %134 : vector<8x128xi32>
    %136 = arith.cmpi eq, %133, %135 : vector<8x128xi32>
    %137 = arith.extui %136 : vector<8x128xi1> to vector<8x128xi32>
    %138 = arith.sitofp %137 : vector<8x128xi32> to vector<8x128xf32>
    %cst_32 = arith.constant dense<0.000000e+00> : vector<16x128xf32>
    %139 = tpu.matmul %40, %138, %cst_32 {dimension_numbers = #tpu.dot_dimension_numbers<[1], [0], [0], [1], [0, 0, 1, 1], [], []>} : vector<16x8xf32>, vector<8x128xf32>, vector<16x128xf32> -> vector<16x128xf32>
    %140 = tpu.iota {dimensions = array<i32: 0>} : vector<8x128xi32>
    %141 = tpu.iota {dimensions = array<i32: 1>} : vector<8x128xi32>
    %c88_i32 = arith.constant 88 : i32
    %142 = vector.broadcast %c88_i32 : i32 to vector<8x128xi32>
    %143 = arith.addi %140, %142 : vector<8x128xi32>
    %144 = arith.cmpi eq, %141, %143 : vector<8x128xi32>
    %145 = arith.extui %144 : vector<8x128xi1> to vector<8x128xi32>
    %146 = arith.sitofp %145 : vector<8x128xi32> to vector<8x128xf32>
    %cst_33 = arith.constant dense<0.000000e+00> : vector<16x128xf32>
    %147 = tpu.matmul %122, %146, %cst_33 {dimension_numbers = #tpu.dot_dimension_numbers<[1], [0], [0], [1], [0, 0, 1, 1], [], []>} : vector<16x8xf32>, vector<8x128xf32>, vector<16x128xf32> -> vector<16x128xf32>
    %148 = arith.truncf %147 : vector<16x128xf32> to vector<16x128xbf16>
    %c384 = arith.constant 384 : index
    %c0_34 = arith.constant 0 : index
    %149 = vector.load %arg2[%c384, %c0_34] : memref<768x128xbf16, #tpu.memory_space<vmem>>, vector<128x128xbf16>
    %cst_35 = arith.constant dense<0.000000e+00> : vector<16x128xf32>
    %150 = tpu.matmul %148, %149, %cst_35 {dimension_numbers = #tpu.dot_dimension_numbers<[1], [0], [0], [1], [0, 0, 1, 1], [], []>} : vector<16x128xbf16>, vector<128x128xbf16>, vector<16x128xf32> -> vector<16x128xf32>
    %151 = vector.extract_strided_slice %1 {offsets = [3, 0], sizes = [1, 128], strides = [1, 1]} : vector<8x128xf32> to vector<1x128xf32>
    %152 = vector.broadcast %151 : vector<1x128xf32> to vector<16x128xf32>
    %153 = arith.addf %150, %152 : vector<16x128xf32>
    %cst_36 = arith.constant 0.000000e+00 : f32
    %154 = vector.broadcast %cst_36 : f32 to vector<16x128xf32>
    %155 = arith.maximumf %153, %154 : vector<16x128xf32>
    %156 = arith.truncf %155 : vector<16x128xf32> to vector<16x128xbf16>
    %c512 = arith.constant 512 : index
    %c0_37 = arith.constant 0 : index
    %157 = vector.load %arg2[%c512, %c0_37] : memref<768x128xbf16, #tpu.memory_space<vmem>>, vector<128x128xbf16>
    %cst_38 = arith.constant dense<0.000000e+00> : vector<16x128xf32>
    %158 = tpu.matmul %156, %157, %cst_38 {dimension_numbers = #tpu.dot_dimension_numbers<[1], [0], [0], [1], [0, 0, 1, 1], [], []>} : vector<16x128xbf16>, vector<128x128xbf16>, vector<16x128xf32> -> vector<16x128xf32>
    %159 = vector.extract_strided_slice %1 {offsets = [4, 0], sizes = [1, 128], strides = [1, 1]} : vector<8x128xf32> to vector<1x128xf32>
    %160 = vector.broadcast %159 : vector<1x128xf32> to vector<16x128xf32>
    %161 = arith.addf %158, %160 : vector<16x128xf32>
    %cst_39 = arith.constant 0.000000e+00 : f32
    %162 = vector.broadcast %cst_39 : f32 to vector<16x128xf32>
    %163 = arith.maximumf %161, %162 : vector<16x128xf32>
    %164 = arith.truncf %163 : vector<16x128xf32> to vector<16x128xbf16>
    %c640 = arith.constant 640 : index
    %c0_40 = arith.constant 0 : index
    %165 = vector.load %arg2[%c640, %c0_40] : memref<768x128xbf16, #tpu.memory_space<vmem>>, vector<128x128xbf16>
    %cst_41 = arith.constant dense<0.000000e+00> : vector<16x128xf32>
    %166 = tpu.matmul %164, %165, %cst_41 {dimension_numbers = #tpu.dot_dimension_numbers<[1], [0], [0], [1], [0, 0, 1, 1], [], []>} : vector<16x128xbf16>, vector<128x128xbf16>, vector<16x128xf32> -> vector<16x128xf32>
    %167 = vector.extract_strided_slice %1 {offsets = [5, 0], sizes = [1, 128], strides = [1, 1]} : vector<8x128xf32> to vector<1x128xf32>
    %168 = vector.broadcast %167 : vector<1x128xf32> to vector<16x128xf32>
    %169 = arith.addf %166, %168 : vector<16x128xf32>
    %170 = tpu.iota {dimensions = array<i32: 1>} : vector<16x128xi32>
    %c64_i32 = arith.constant 64 : i32
    %171 = vector.broadcast %c64_i32 : i32 to vector<16x128xi32>
    %172 = arith.cmpi sge, %170, %171 : vector<16x128xi32>
    %c72_i32 = arith.constant 72 : i32
    %173 = vector.broadcast %c72_i32 : i32 to vector<16x128xi32>
    %174 = arith.cmpi slt, %170, %173 : vector<16x128xi32>
    %175 = arith.andi %172, %174 : vector<16x128xi1>
    %c72_i32_42 = arith.constant 72 : i32
    %176 = vector.broadcast %c72_i32_42 : i32 to vector<16x128xi32>
    %177 = arith.cmpi sge, %170, %176 : vector<16x128xi32>
    %c80_i32_43 = arith.constant 80 : i32
    %178 = vector.broadcast %c80_i32_43 : i32 to vector<16x128xi32>
    %179 = arith.cmpi slt, %170, %178 : vector<16x128xi32>
    %180 = arith.andi %177, %179 : vector<16x128xi1>
    %cst_44 = arith.constant 0.000000e+00 : f32
    %181 = vector.broadcast %cst_44 : f32 to vector<16x128xf32>
    %182 = arith.select %180, %31, %181 : vector<16x128xi1>, vector<16x128xf32>
    %183 = arith.select %175, %23, %182 : vector<16x128xi1>, vector<16x128xf32>
    %c96_i32 = arith.constant 96 : i32
    %184 = vector.broadcast %c96_i32 : i32 to vector<16x128xi32>
    %185 = arith.cmpi sge, %170, %184 : vector<16x128xi32>
    %186 = vector.shape_cast %131 : vector<16x1xf32> to vector<16x1xf32>
    %187 = vector.broadcast %186 : vector<16x1xf32> to vector<16x128xf32>
    %cst_45 = arith.constant 0.000000e+00 : f32
    %188 = vector.broadcast %cst_45 : f32 to vector<16x128xf32>
    %189 = arith.select %185, %187, %188 : vector<16x128xi1>, vector<16x128xf32>
    %190 = arith.addf %169, %183 : vector<16x128xf32>
    %191 = arith.addf %190, %139 : vector<16x128xf32>
    %192 = arith.addf %191, %147 : vector<16x128xf32>
    %193 = arith.addf %192, %189 : vector<16x128xf32>
    %c0_46 = arith.constant 0 : index
    %c0_47 = arith.constant 0 : index
    %194 = vector.load %arg4[%c0_46, %c0_47] : memref<16x128xf32, #tpu.memory_space<vmem>>, vector<16x128xf32>
    tpu.vector_store %arg4[%c0_46, %c0_47], %193 {strides = array<i32>} : memref<16x128xf32, #tpu.memory_space<vmem>>, vector<16x128xf32>,
    return
  }
  func.func @transform_0(%arg0: i32) -> (i32, i32) {
    %c0_i32 = arith.constant 0 : i32
    %c0_i32_0 = arith.constant 0 : i32
    return %arg0, %c0_i32 : i32, i32
  }
  func.func @transform_1(%arg0: i32) -> (i32, i32) {
    %c0_i32 = arith.constant 0 : i32
    %c0_i32_0 = arith.constant 0 : i32
    %c0_i32_1 = arith.constant 0 : i32
    return %c0_i32, %c0_i32_0 : i32, i32
  }
  func.func @transform_2(%arg0: i32) -> (i32, i32) {
    %c0_i32 = arith.constant 0 : i32
    %c0_i32_0 = arith.constant 0 : i32
    %c0_i32_1 = arith.constant 0 : i32
    return %c0_i32, %c0_i32_0 : i32, i32
  }
  func.func @transform_3(%arg0: i32) -> (i32, i32) {
    %c0_i32 = arith.constant 0 : i32
    %c0_i32_0 = arith.constant 0 : i32
    return %arg0, %c0_i32 : i32, i32
  }
}

</mosaic_0001>

<llo_original>
// kernel: tpu_custom_call.1
$region0: #{tpu_custom_call.1}
  #allocation0 [shape = 'u32[]', space=smem, size = 0x4, offset = 0x4, fixed_abs, tag = 'smem constant byte address 0x4 - core index']
  #allocation1 [shape = 'u32[144,128]{1,0:T(1,128)}', space=vmem, size = 0x12000, scoped, tag = 'internal scratch']
  %s0 = inlined_call_operand.hbm [shape: f32[32,128], index: 0, kind: input, shape index: {}]
  %s1 = inlined_call_operand.hbm [shape: bf16[768,128], index: 1, kind: input, shape index: {}]
  %s2 = inlined_call_operand.hbm [shape: f32[8,128], index: 2, kind: input, shape index: {}]
  %s3 = inlined_call_operand.hbm [shape: f32[32,128], index: 3, kind: output, shape index: {}]
  %s4 = sld [smem:[#allocation0]]
  $region57: #{tpu_custom_call.1} parent=0
    _
  %s6 = ssub.s32 1, %s4
  %s7 = scalar_select 0, %s6, %s4
  $region1: #{tpu_custom_call.1} parent=0
    #allocation2 [shape = 'u8[16384]{0}', space=vmem, size = 0x4000, scoped, tag = 'input window, operand 0']
    #allocation3 [shape = 's32[2]{0}', space=sflag, size = 0x8, scoped, tag = 'scoped memory for tpu_custom_call.1']
    #allocation4 [shape = 's32[2]{0}', space=sflag, size = 0x8, scoped, tag = 'scoped memory for tpu_custom_call.1']
    #allocation5 [shape = 'u8[196608]{0}', space=vmem, size = 0x30000, scoped, tag = 'input window, operand 1, single buffered']
    #allocation6 [shape = 's32[1]{0}', space=sflag, size = 0x4, scoped, tag = 'scoped memory for tpu_custom_call.1']
    #allocation7 [shape = 'u8[4096]{0}', space=vmem, size = 0x1000, scoped, tag = 'input window, operand 2, single buffered']
    #allocation8 [shape = 'u8[16384]{0}', space=vmem, size = 0x4000, scoped, tag = 'output window, operand 0']
    %8 = vsyncpa [#allocation3], 0
    %s9 = scalar_lea.sflag [#allocation3], 1
    %10 = vsyncpa %s9, 0
    %11 = vsyncpa [#allocation6], 0
    %12 = vsyncpa [#allocation4], 0
    %s13 = scalar_lea.sflag [#allocation4], 1
    %14 = vsyncpa %s13, 0
    loop: start=0, step=1, limit=4
    $region2: #{tpu_custom_call.1} parent=1 // loop_pre_header
      _
    $region3: #{tpu_custom_call.1} parent=1 // loop_header
      %s16 = sphi 0, %s20
      %p17 = scmp.ge.s32.totalorder %s16, 4
      %s26 = sphi 0, %s28
      %s29 = sphi 0, %s26
      %s30 = sphi 0, %s29
      %s46 = sphi 0, %s30
      %s50 = sphi 0, %s50
      %s52 = sphi 0, %s50
      %s53 = sphi 0, %s52
      %s67 = sphi 0, %s53
      %s71 = sphi 0, %s71
      %s73 = sphi 0, %s71
      %s74 = sphi 0, %s73
      %s88 = sphi 0, %s74
      %s94 = sphi 0, %s96
      %s97 = sphi 0, %s94
      %s98 = sphi 0, %s97
      %s114 = sphi 0, %s98
    $region4: #{tpu_custom_call.1} parent=1 // loop_header_branch
      %19 = sbr.rel (%p17) target = $region8
    $region5: #{tpu_custom_call.1} parent=1 // loop_body
      %s21 = ssub.s32 %s16, 1
      %s22 = ssub.s32 %s16, 2
      %s23 = sadd.s32 %s16, 1
      %s24 = ssub.s32 %s16, %s23
      %p25 = scmp.eq.s32.totalorder %s24, 0
      %s27 = sadd.s32 %s26, 1
      %s28 = scalar_select %p25, %s26, %s27
      %p31 = pneg %p25
      %p32 = scmp.eq.s32.totalorder %s16, 1
      %p33 = por %p31, %p32
      %p34 = scmp.ne.s32.totalorder %s26, %s29
      %p35 = scmp.eq.s32.totalorder %s16, 0
      %p36 = por %p34, %p35
      %p37 = scmp.ne.s32.totalorder %s26, %s29
      %p38 = scmp.eq.s32.totalorder %s21, 1
      %p39 = por %p37, %p38
      %p40 = scmp.ne.s32.totalorder %s29, %s30
      %p41 = scmp.eq.s32.totalorder %s21, 0
      %p42 = por %p40, %p41
      %p43 = scmp.ne.s32.totalorder %s29, %s30
      %p44 = scmp.eq.s32.totalorder %s22, 1
      %p45 = por %p43, %p44
      %p47 = scmp.ne.s32.totalorder %s30, %s46
      %p48 = scmp.eq.s32.totalorder %s22, 0
      %p49 = por %p47, %p48
      %s51 = sadd.s32 %s50, 1
      %p54 = scmp.eq.s32.totalorder %s16, 1
      %p55 = scmp.ne.s32.totalorder %s50, %s52
      %p56 = scmp.eq.s32.totalorder %s16, 0
      %p57 = por %p55, %p56
      %p58 = scmp.ne.s32.totalorder %s50, %s52
      %p59 = scmp.eq.s32.totalorder %s21, 1
      %p60 = por %p58, %p59
      %p61 = scmp.ne.s32.totalorder %s52, %s53
      %p62 = scmp.eq.s32.totalorder %s21, 0
      %p63 = por %p61, %p62
      %p64 = scmp.ne.s32.totalorder %s52, %s53
      %p65 = scmp.eq.s32.totalorder %s22, 1
      %p66 = por %p64, %p65
      %p68 = scmp.ne.s32.totalorder %s53, %s67
      %p69 = scmp.eq.s32.totalorder %s22, 0
      %p70 = por %p68, %p69
      %s72 = sadd.s32 %s71, 1
      %p75 = scmp.eq.s32.totalorder %s16, 1
      %p76 = scmp.ne.s32.totalorder %s71, %s73
      %p77 = scmp.eq.s32.totalorder %s16, 0
      %p78 = por %p76, %p77
      %p79 = scmp.ne.s32.totalorder %s71, %s73
      %p80 = scmp.eq.s32.totalorder %s21, 1
      %p81 = por %p79, %p80
      %p82 = scmp.ne.s32.totalorder %s73, %s74
      %p83 = scmp.eq.s32.totalorder %s21, 0
      %p84 = por %p82, %p83
      %p85 = scmp.ne.s32.totalorder %s73, %s74
      %p86 = scmp.eq.s32.totalorder %s22, 1
      %p87 = por %p85, %p86
      %p89 = scmp.ne.s32.totalorder %s74, %s88
      %p90 = scmp.eq.s32.totalorder %s22, 0
      %p91 = por %p89, %p90
      %s92 = ssub.s32 %s16, %s23
      %p93 = scmp.eq.s32.totalorder %s92, 0
      %s95 = sadd.s32 %s94, 1
      %s96 = scalar_select %p93, %s94, %s95
      %p99 = pneg %p93
      %p100 = scmp.eq.s32.totalorder %s16, 1
      %p101 = por %p99, %p100
      %p102 = scmp.ne.s32.totalorder %s94, %s97
      %p103 = scmp.eq.s32.totalorder %s16, 0
      %p104 = por %p102, %p103
      %p105 = scmp.ne.s32.totalorder %s94, %s97
      %p106 = scmp.eq.s32.totalorder %s21, 1
      %p107 = por %p105, %p106
      %p108 = scmp.ne.s32.totalorder %s97, %s98
      %p109 = scmp.eq.s32.totalorder %s21, 0
      %p110 = por %p108, %p109
      %p111 = scmp.ne.s32.totalorder %s97, %s98
      %p112 = scmp.eq.s32.totalorder %s22, 1
      %p113 = por %p111, %p112
      %p115 = scmp.ne.s32.totalorder %s98, %s114
      %p116 = scmp.eq.s32.totalorder %s22, 0
      %p117 = por %p115, %p116
      %p118 = scmp.le.s32.totalorder 1, %s16
      %p119 = scmp.lt.s32.totalorder %s16, 3
      %p120 = pnand %p118, %p119
      %p121 = pneg %p120
      // Predicated region
      $region9: #{tpu_custom_call.1} parent=5 // pred_check
        _
      $region10: #{tpu_custom_call.1} parent=5 // pred_check_branch
        %123 = sbr.rel (%p120) target = $region12
      $region11: #{tpu_custom_call.1} parent=5 // pred_region
        %s124 = ssub.s32 %s16, 1
        // Predicated region
        $region13: #{tpu_custom_call.1} parent=11 // pred_check
          %p125 = pneg %p63
        $region14: #{tpu_custom_call.1} parent=11 // pred_check_branch
          %127 = sbr.rel (%p125) target = $region16
        $region15: #{tpu_custom_call.1} parent=11 // pred_region
          %s129 = ssub.s32 6144, 6144
          %130 = vsyncadd [#allocation6], %s129
          %s131 = sshll.u32 [#allocation5], 4
          %s132 = int_to_ptr.vmem [resolvable:$true] %s131
          %137 = dma.hbm_to_vmem [thread:$0]  %s1, 6144, %s132, [#allocation6], 64, 64, 4
        $region16: #{tpu_custom_call.1} parent=11 // pred_fallthru
          _
        // Predicated region
        $region17: #{tpu_custom_call.1} parent=11 // pred_check
          %p138 = pneg %p84
        $region18: #{tpu_custom_call.1} parent=11 // pred_check_branch
          %140 = sbr.rel (%p138) target = $region20
        $region19: #{tpu_custom_call.1} parent=11 // pred_region
          %s142 = ssub.s32 128, 128
          %143 = vsyncadd [#allocation6], %s142
          %s145 = sshll.u32 [#allocation7], 4
          %s146 = int_to_ptr.vmem [resolvable:$true] %s145
          %148 = dma.hbm_to_vmem [thread:$0]  %s2, 128, %s146, [#allocation6]
        $region20: #{tpu_custom_call.1} parent=11 // pred_fallthru
          _
      $region12: #{tpu_custom_call.1} parent=5 // pred_fallthru
        _
      %p149 = scmp.lt.s32.totalorder %s16, 2
      // Predicated region
      $region21: #{tpu_custom_call.1} parent=5 // pred_check
        %p150 = pneg %p149
      $region22: #{tpu_custom_call.1} parent=5 // pred_check_branch
        %152 = sbr.rel (%p150) target = $region24
      $region23: #{tpu_custom_call.1} parent=5 // pred_region
        // Predicated region
        $region25: #{tpu_custom_call.1} parent=23 // pred_check
          %p153 = pneg %p36
        $region26: #{tpu_custom_call.1} parent=23 // pred_check_branch
          %155 = sbr.rel (%p153) target = $region28
        $region27: #{tpu_custom_call.1} parent=23 // pred_region
          %s156 = sand.u32 %s26, 1
          %s157 = scalar_lea.sflag [#allocation3], %s156
          %s158 = sand.u32 %s26, 1
          %s159 = smul.addr %s158, 16
          %s160 = scalar_lea.vmem [#allocation2], %s159
          %s161 = smul.u32 2, %s16
          %s163 = ssub.s32 256, 256
          %164 = vsyncadd %s157, %s163
          %s165 = smul.addr %s161, 128
          %s166 = scalar_lea.hbm %s0, %s165
          %s167 = sshll.u32 %s160, 4
          %s168 = int_to_ptr.vmem [resolvable:$true] %s167
          %173 = dma.hbm_to_vmem [thread:$0]  %s166, 256, %s168, %s157, 128, 128, 8
        $region28: #{tpu_custom_call.1} parent=23 // pred_fallthru
          _
      $region24: #{tpu_custom_call.1} parent=5 // pred_fallthru
        _
      %p174 = scmp.le.s32.totalorder 1, %s16
      %p175 = scmp.lt.s32.totalorder %s16, 3
      %p176 = pnand %p174, %p175
      %p177 = pneg %p176
      // Predicated region
      $region29: #{tpu_custom_call.1} parent=5 // pred_check
        _
      $region30: #{tpu_custom_call.1} parent=5 // pred_check_branch
        %179 = sbr.rel (%p176) target = $region32
      $region31: #{tpu_custom_call.1} parent=5 // pred_region
        %s180 = ssub.s32 %s16, 1
        %s181 = sand.u32 %s29, 1
        %s182 = scalar_lea.sflag [#allocation3], %s181
        %s183 = sand.u32 %s29, 1
        %s184 = smul.addr %s183, 16
        %s185 = scalar_lea.vmem [#allocation2], %s184
        // Predicated region
        $region33: #{tpu_custom_call.1} parent=31 // pred_check
          %p186 = pneg %p42
        $region34: #{tpu_custom_call.1} parent=31 // pred_check_branch
          %188 = sbr.rel (%p186) target = $region36
        $region35: #{tpu_custom_call.1} parent=31 // pred_region
          %189 = dma.done %s182, 256
        $region36: #{tpu_custom_call.1} parent=31 // pred_fallthru
          _
        // Predicated region
        $region37: #{tpu_custom_call.1} parent=31 // pred_check
          %p190 = pneg %p63
        $region38: #{tpu_custom_call.1} parent=31 // pred_check_branch
          %192 = sbr.rel (%p190) target = $region40
        $region39: #{tpu_custom_call.1} parent=31 // pred_region
          %193 = dma.done [#allocation6], 6144
        $region40: #{tpu_custom_call.1} parent=31 // pred_fallthru
          _
        // Predicated region
        $region41: #{tpu_custom_call.1} parent=31 // pred_check
          %p194 = pneg %p84
        $region42: #{tpu_custom_call.1} parent=31 // pred_check_branch
          %196 = sbr.rel (%p194) target = $region44
        $region43: #{tpu_custom_call.1} parent=31 // pred_region
          %197 = dma.done [#allocation6], 128
        $region44: #{tpu_custom_call.1} parent=31 // pred_fallthru
          _
        %s198 = sand.u32 %s29, 1
        %s199 = scalar_lea.sflag [#allocation3], %s198
        %s200 = sand.u32 %s29, 1
        %s201 = smul.addr %s200, 16
        %s202 = scalar_lea.vmem [#allocation2], %s201
        %p203 = pneg %p42
        %p204 = pneg %p39
        %p205 = pneg %p63
        %p206 = pneg %p60
        %p207 = pneg %p84
        %p208 = pneg %p81
        %p209 = pneg %p110
        %p210 = pneg %p107
        %s211 = sand.u32 %s97, 1
        %s212 = scalar_lea.sflag [#allocation4], %s211
        %s213 = sand.u32 %s97, 1
        %s214 = smul.addr %s213, 16
        %s215 = scalar_lea.vmem [#allocation8], %s214
        %s216 = smul.u32 2, %s21
        %s217 = smul.u32 2, %s21
        %v219 = vld [vmem:[%s185] sm:$0xff]
        %v220 = vld [vmem:[%s185 + $0x8] sm:$0xff]
        %v221 = vld [vmem:[#allocation7] sm:$0xff]
        %v222 = vpack.c.bf16 %v220, %v219
        %v223 = vld [vmem:[#allocation5] sm:$0xf]
        %v224 = vld [vmem:[#allocation5 + $0x4] sm:$0xf]
        %v225 = vld [vmem:[#allocation5 + $0x8] sm:$0xf]
        %v226 = vld [vmem:[#allocation5 + $0xc] sm:$0xf]
        %v227 = vld [vmem:[#allocation5 + $0x10] sm:$0xf]
        %v228 = vld [vmem:[#allocation5 + $0x14] sm:$0xf]
        %v229 = vld [vmem:[#allocation5 + $0x18] sm:$0xf]
        %v230 = vld [vmem:[#allocation5 + $0x1c] sm:$0xf]
        %v231 = vld [vmem:[#allocation5 + $0x20] sm:$0xf]
        %v232 = vld [vmem:[#allocation5 + $0x24] sm:$0xf]
        %v233 = vld [vmem:[#allocation5 + $0x28] sm:$0xf]
        %v234 = vld [vmem:[#allocation5 + $0x2c] sm:$0xf]
        %v235 = vld [vmem:[#allocation5 + $0x30] sm:$0xf]
        %v236 = vld [vmem:[#allocation5 + $0x34] sm:$0xf]
        %v237 = vld [vmem:[#allocation5 + $0x38] sm:$0xf]
        %v238 = vld [vmem:[#allocation5 + $0x3c] sm:$0xf]
        %v239 = vlaneseq
        %v240 = vshrl.u32 %v239, 7
        %v241 = vsub.s32 0, %v240
        %v242 = vrot.slane %v221, %v241
        %v259 = vunpack.c.l.b16 %v223
        %v260 = vunpack.c.l.b16 %v224
        %v261 = vunpack.c.l.b16 %v225
        %v262 = vunpack.c.l.b16 %v226
        %v263 = vunpack.c.l.b16 %v227
        %v264 = vunpack.c.l.b16 %v228
        %v265 = vunpack.c.l.b16 %v229
        %v266 = vunpack.c.l.b16 %v230
        %v267 = vunpack.c.l.b16 %v231
        %v268 = vunpack.c.l.b16 %v232
        %v269 = vunpack.c.l.b16 %v233
        %v270 = vunpack.c.l.b16 %v234
        %v271 = vunpack.c.l.b16 %v235
        %v272 = vunpack.c.l.b16 %v236
        %v273 = vunpack.c.l.b16 %v237
        %v274 = vunpack.c.l.b16 %v238
        %v275 = vpack.c.b16 %v260, %v259
        %v276 = vpack.c.b16 %v262, %v261
        %v277 = vpack.c.b16 %v264, %v263
        %v278 = vpack.c.b16 %v266, %v265
        %v279 = vpack.c.b16 %v268, %v267
        %v280 = vpack.c.b16 %v270, %v269
        %v281 = vpack.c.b16 %v272, %v271
        %v282 = vpack.c.b16 %v274, %v273
        %291 = vmatprep.subr.bf16.mxu0 0
        %292 = vmatpush1.bf16.msra.mxu0 %v275
        %293 = vmatprep.subr.bf16.mxu0 0
        %294 = vmatpush1.bf16.msra.mxu0 %v276
        %295 = vmatprep.subr.bf16.mxu0 0
        %296 = vmatpush1.bf16.msra.mxu0 %v277
        %297 = vmatprep.subr.bf16.mxu0 0
        %298 = vmatpush1.bf16.msra.mxu0 %v278
        %299 = vmatprep.subr.bf16.mxu0 0
        %300 = vmatpush1.bf16.msra.mxu0 %v279
        %301 = vmatprep.subr.bf16.mxu0 0
        %302 = vmatpush1.bf16.msra.mxu0 %v280
        %303 = vmatprep.subr.bf16.mxu0 0
        %304 = vmatpush1.bf16.msra.mxu0 %v281
        %305 = vmatprep.subr.bf16.mxu0 0
        %306 = vmatpush1.bf16.msra.mxu0 %v282
        %307 = vmatprep.subr.bf16.mxu0 0
        %308 = vmatpush1.bf16.msra.mxu0 0
        %309 = vmatprep.subr.bf16.mxu0 0
        %310 = vmatpush1.bf16.msra.mxu0 0
        %311 = vmatprep.subr.bf16.mxu0 0
        %312 = vmatpush1.bf16.msra.mxu0 0
        %313 = vmatprep.subr.bf16.mxu0 0
        %314 = vmatpush1.bf16.msra.mxu0 0
        %315 = vmatprep.subr.bf16.mxu0 0
        %316 = vmatpush1.bf16.msra.mxu0 0
        %317 = vmatprep.subr.bf16.mxu0 0
        %318 = vmatpush1.bf16.msra.mxu0 0
        %319 = vmatprep.subr.bf16.mxu0 0
        %320 = vmatpush1.bf16.msra.mxu0 0
        %321 = vmatprep.subr.bf16.mxu0 0
        %322 = vmatpush1.bf16.msra.mxu0 0
        %323 = vmatprep.mubr.bf16.mxu0 0
        %324 = vmatmul.mubr.bf16.gmra.mrb[0].mxu0 %v222
        %v325 = vpop.f32.mrb[0].mxu0
        %v326 = vadd.f32 %v242, %v325
        %v327 = vpop.f32.mrb[0].mxu0
        %v328 = vpop.f32.mrb[0].mxu0
        %v329 = vadd.f32 %v242, %v328
        %v330 = vpop.f32.mrb[0].mxu0
        %331 = vdwg.mxu0
        %v332 = vmax.f32 %v326, 0.0
        %v333 = vmax.f32 %v329, 0.0
        %v334 = vpack.c.bf16 %v333, %v332
        %v335 = vld [vmem:[#allocation5 + $0x40] sm:$0xf]
        %v336 = vld [vmem:[#allocation5 + $0x44] sm:$0xf]
        %v337 = vld [vmem:[#allocation5 + $0x48] sm:$0xf]
        %v338 = vld [vmem:[#allocation5 + $0x4c] sm:$0xf]
        %v339 = vld [vmem:[#allocation5 + $0x50] sm:$0xf]
        %v340 = vld [vmem:[#allocation5 + $0x54] sm:$0xf]
        %v341 = vld [vmem:[#allocation5 + $0x58] sm:$0xf]
        %v342 = vld [vmem:[#allocation5 + $0x5c] sm:$0xf]
        %v343 = vld [vmem:[#allocation5 + $0x60] sm:$0xf]
        %v344 = vld [vmem:[#allocation5 + $0x64] sm:$0xf]
        %v345 = vld [vmem:[#allocation5 + $0x68] sm:$0xf]
        %v346 = vld [vmem:[#allocation5 + $0x6c] sm:$0xf]
        %v347 = vld [vmem:[#allocation5 + $0x70] sm:$0xf]
        %v348 = vld [vmem:[#allocation5 + $0x74] sm:$0xf]
        %v349 = vld [vmem:[#allocation5 + $0x78] sm:$0xf]
        %v350 = vld [vmem:[#allocation5 + $0x7c] sm:$0xf]
        %v351 = vlaneseq
        %v352 = vshrl.u32 %v351, 7
        %v353 = vsub.s32 1, %v352
        %v354 = vrot.slane %v221, %v353
        %v371 = vunpack.c.l.b16 %v335
        %v372 = vunpack.c.l.b16 %v336
        %v373 = vunpack.c.l.b16 %v337
        %v374 = vunpack.c.l.b16 %v338
        %v375 = vunpack.c.l.b16 %v339
        %v376 = vunpack.c.l.b16 %v340
        %v377 = vunpack.c.l.b16 %v341
        %v378 = vunpack.c.l.b16 %v342
        %v379 = vunpack.c.l.b16 %v343
        %v380 = vunpack.c.l.b16 %v344
        %v381 = vunpack.c.l.b16 %v345
        %v382 = vunpack.c.l.b16 %v346
        %v383 = vunpack.c.l.b16 %v347
        %v384 = vunpack.c.l.b16 %v348
        %v385 = vunpack.c.l.b16 %v349
        %v386 = vunpack.c.l.b16 %v350
        %v387 = vpack.c.b16 %v372, %v371
        %v388 = vpack.c.b16 %v374, %v373
        %v389 = vpack.c.b16 %v376, %v375
        %v390 = vpack.c.b16 %v378, %v377
        %v391 = vpack.c.b16 %v380, %v379
        %v392 = vpack.c.b16 %v382, %v381
        %v393 = vpack.c.b16 %v384, %v383
        %v394 = vpack.c.b16 %v386, %v385
        %403 = vmatprep.subr.bf16.mxu0 0
        %404 = vmatpush1.bf16.msra.mxu0 %v387
        %405 = vmatprep.subr.bf16.mxu0 0
        %406 = vmatpush1.bf16.msra.mxu0 %v388
        %407 = vmatprep.subr.bf16.mxu0 0
        %408 = vmatpush1.bf16.msra.mxu0 %v389
        %409 = vmatprep.subr.bf16.mxu0 0
        %410 = vmatpush1.bf16.msra.mxu0 %v390
        %411 = vmatprep.subr.bf16.mxu0 0
        %412 = vmatpush1.bf16.msra.mxu0 %v391
        %413 = vmatprep.subr.bf16.mxu0 0
        %414 = vmatpush1.bf16.msra.mxu0 %v392
        %415 = vmatprep.subr.bf16.mxu0 0
        %416 = vmatpush1.bf16.msra.mxu0 %v393
        %417 = vmatprep.subr.bf16.mxu0 0
        %418 = vmatpush1.bf16.msra.mxu0 %v394
        %419 = vmatprep.subr.bf16.mxu0 0
        %420 = vmatpush1.bf16.msra.mxu0 0
        %421 = vmatprep.subr.bf16.mxu0 0
        %422 = vmatpush1.bf16.msra.mxu0 0
        %423 = vmatprep.subr.bf16.mxu0 0
        %424 = vmatpush1.bf16.msra.mxu0 0
        %425 = vmatprep.subr.bf16.mxu0 0
        %426 = vmatpush1.bf16.msra.mxu0 0
        %427 = vmatprep.subr.bf16.mxu0 0
        %428 = vmatpush1.bf16.msra.mxu0 0
        %429 = vmatprep.subr.bf16.mxu0 0
        %430 = vmatpush1.bf16.msra.mxu0 0
        %431 = vmatprep.subr.bf16.mxu0 0
        %432 = vmatpush1.bf16.msra.mxu0 0
        %433 = vmatprep.subr.bf16.mxu0 0
        %434 = vmatpush1.bf16.msra.mxu0 0
        %435 = vmatprep.mubr.bf16.mxu0 0
        %436 = vmatmul.mubr.bf16.gmra.mrb[0].mxu0 %v334
        %v437 = vpop.f32.mrb[0].mxu0
        %v438 = vadd.f32 %v354, %v437
        %v439 = vpop.f32.mrb[0].mxu0
        %v440 = vpop.f32.mrb[0].mxu0
        %v441 = vadd.f32 %v354, %v440
        %v442 = vpop.f32.mrb[0].mxu0
        %443 = vdwg.mxu0
        %v444 = vmax.f32 %v438, 0.0
        %v445 = vmax.f32 %v441, 0.0
        %v446 = vpack.c.bf16 %v445, %v444
        %v447 = vld [vmem:[#allocation5 + $0x80] sm:$0xf]
        %v448 = vld [vmem:[#allocation5 + $0x84] sm:$0xf]
        %v449 = vld [vmem:[#allocation5 + $0x88] sm:$0xf]
        %v450 = vld [vmem:[#allocation5 + $0x8c] sm:$0xf]
        %v451 = vld [vmem:[#allocation5 + $0x90] sm:$0xf]
        %v452 = vld [vmem:[#allocation5 + $0x94] sm:$0xf]
        %v453 = vld [vmem:[#allocation5 + $0x98] sm:$0xf]
        %v454 = vld [vmem:[#allocation5 + $0x9c] sm:$0xf]
        %v455 = vld [vmem:[#allocation5 + $0xa0] sm:$0xf]
        %v456 = vld [vmem:[#allocation5 + $0xa4] sm:$0xf]
        %v457 = vld [vmem:[#allocation5 + $0xa8] sm:$0xf]
        %v458 = vld [vmem:[#allocation5 + $0xac] sm:$0xf]
        %v459 = vld [vmem:[#allocation5 + $0xb0] sm:$0xf]
        %v460 = vld [vmem:[#allocation5 + $0xb4] sm:$0xf]
        %v461 = vld [vmem:[#allocation5 + $0xb8] sm:$0xf]
        %v462 = vld [vmem:[#allocation5 + $0xbc] sm:$0xf]
        %v463 = vlaneseq
        %v464 = vshrl.u32 %v463, 7
        %v465 = vsub.s32 2, %v464
        %v466 = vrot.slane %v221, %v465
        %v483 = vunpack.c.l.b16 %v447
        %v484 = vunpack.c.l.b16 %v448
        %v485 = vunpack.c.l.b16 %v449
        %v486 = vunpack.c.l.b16 %v450
        %v487 = vunpack.c.l.b16 %v451
        %v488 = vunpack.c.l.b16 %v452
        %v489 = vunpack.c.l.b16 %v453
        %v490 = vunpack.c.l.b16 %v454
        %v491 = vunpack.c.l.b16 %v455
        %v492 = vunpack.c.l.b16 %v456
        %v493 = vunpack.c.l.b16 %v457
        %v494 = vunpack.c.l.b16 %v458
        %v495 = vunpack.c.l.b16 %v459
        %v496 = vunpack.c.l.b16 %v460
        %v497 = vunpack.c.l.b16 %v461
        %v498 = vunpack.c.l.b16 %v462
        %v499 = vpack.c.b16 %v484, %v483
        %v500 = vpack.c.b16 %v486, %v485
        %v501 = vpack.c.b16 %v488, %v487
        %v502 = vpack.c.b16 %v490, %v489
        %v503 = vpack.c.b16 %v492, %v491
        %v504 = vpack.c.b16 %v494, %v493
        %v505 = vpack.c.b16 %v496, %v495
        %v506 = vpack.c.b16 %v498, %v497
        %515 = vmatprep.subr.bf16.mxu0 0
        %516 = vmatpush1.bf16.msra.mxu0 %v499
        %517 = vmatprep.subr.bf16.mxu0 0
        %518 = vmatpush1.bf16.msra.mxu0 %v500
        %519 = vmatprep.subr.bf16.mxu0 0
        %520 = vmatpush1.bf16.msra.mxu0 %v501
        %521 = vmatprep.subr.bf16.mxu0 0
        %522 = vmatpush1.bf16.msra.mxu0 %v502
        %523 = vmatprep.subr.bf16.mxu0 0
        %524 = vmatpush1.bf16.msra.mxu0 %v503
        %525 = vmatprep.subr.bf16.mxu0 0
        %526 = vmatpush1.bf16.msra.mxu0 %v504
        %527 = vmatprep.subr.bf16.mxu0 0
        %528 = vmatpush1.bf16.msra.mxu0 %v505
        %529 = vmatprep.subr.bf16.mxu0 0
        %530 = vmatpush1.bf16.msra.mxu0 %v506
        %531 = vmatprep.subr.bf16.mxu0 0
        %532 = vmatpush1.bf16.msra.mxu0 0
        %533 = vmatprep.subr.bf16.mxu0 0
        %534 = vmatpush1.bf16.msra.mxu0 0
        %535 = vmatprep.subr.bf16.mxu0 0
        %536 = vmatpush1.bf16.msra.mxu0 0
        %537 = vmatprep.subr.bf16.mxu0 0
        %538 = vmatpush1.bf16.msra.mxu0 0
        %539 = vmatprep.subr.bf16.mxu0 0
        %540 = vmatpush1.bf16.msra.mxu0 0
        %541 = vmatprep.subr.bf16.mxu0 0
        %542 = vmatpush1.bf16.msra.mxu0 0
        %543 = vmatprep.subr.bf16.mxu0 0
        %544 = vmatpush1.bf16.msra.mxu0 0
        %545 = vmatprep.subr.bf16.mxu0 0
        %546 = vmatpush1.bf16.msra.mxu0 0
        %547 = vmatprep.mubr.bf16.mxu0 0
        %548 = vmatmul.mubr.bf16.gmra.mrb[0].mxu0 %v446
        %v549 = vpop.f32.mrb[0].mxu0
        %v550 = vadd.f32 %v466, %v549
        %v551 = vpop.f32.mrb[0].mxu0
        %v552 = vpop.f32.mrb[0].mxu0
        %v553 = vadd.f32 %v466, %v552
        %v554 = vpop.f32.mrb[0].mxu0
        %555 = vdwg.mxu0
        %v556 = vmax.f32 %v550, 0.0
        %v557 = vmax.f32 %v553, 0.0
        %v558 = vand.u32 2147483647, %v550
        %v559 = vand.u32 2147483647, %v553
        %v560 = vsub.f32 0.0, %v558
        %v561 = vsub.f32 0.0, %v559
        %v562 = vmul.f32 %v560, 1.442695
        %v563 = vpow.pop %v562
        %v564 = vmul.f32 %v561, 1.442695
        %v565 = vpow.pop %v564
        %v566 = vadd.f32 %v563, 1.0
        %v567 = vlog2.pop %v566
        %v568 = vmul.f32 %v567, 0.6931472
        %v569 = vmul.f32 -0.5, %v563
        %v570 = vadd.f32 %v569, 1.0
        %v571 = vmul.f32 %v570, %v563
        %v572 = vand.u32 2147483647, %v563
        %vm573 = vcmp.lt.f32.partialorder %v572, 0.0004427343
        %v574 = vsel %vm573, %v571, %v568
        %v575 = vadd.f32 %v565, 1.0
        %v576 = vlog2.pop %v575
        %v577 = vmul.f32 %v576, 0.6931472
        %v578 = vmul.f32 -0.5, %v565
        %v579 = vadd.f32 %v578, 1.0
        %v580 = vmul.f32 %v579, %v565
        %v581 = vand.u32 2147483647, %v565
        %vm582 = vcmp.lt.f32.partialorder %v581, 0.0004427343
        %v583 = vsel %vm582, %v580, %v577
        %v584 = vadd.f32 %v556, %v574
        %v585 = vadd.f32 %v557, %v583
        %v586 = vrsqrt.pop %v584
        %v587 = vmul.f32 %v584, %v586
        %vm588 = vcmp.eq.f32.partialorder %v584, inf
        %v589 = vsel %vm588, %v584, %v587
        %vm590 = vcmp.eq.f32.partialorder %v584, 0.0
        %v591 = vand.u32 %v584, 2147483648
        %v592 = vsel %vm590, %v591, %v589
        %v593 = vrsqrt.pop %v585
        %v594 = vmul.f32 %v585, %v593
        %vm595 = vcmp.eq.f32.partialorder %v585, inf
        %v596 = vsel %vm595, %v585, %v594
        %vm597 = vcmp.eq.f32.partialorder %v585, 0.0
        %v598 = vand.u32 %v585, 2147483648
        %v599 = vsel %vm597, %v598, %v596
        %602 = vrot.lane.b32.xlu0 %v219, 8
        %v603 = vpop.permute.xlu0 %602
        %604 = vrot.lane.b32.xlu0 %v220, 8
        %v605 = vpop.permute.xlu0 %604
        %v608 = vmul.f32 %v592, %v603
        %v609 = vmul.f32 %v599, %v605
        %612 = vrot.lane.b32.xlu0 %v608, 120
        %v613 = vpop.permute.xlu0 %612
        %614 = vrot.lane.b32.xlu0 %v609, 120
        %v615 = vpop.permute.xlu0 %614
        %v618 = vadd.f32 %v550, %v613
        %v619 = vadd.f32 %v553, %v615
        %622 = vrot.lane.b32.xlu0 %v550, 16
        %v623 = vpop.permute.xlu0 %622
        %624 = vrot.lane.b32.xlu0 %v553, 16
        %v625 = vpop.permute.xlu0 %624
        %v628 = vmul.f32 %v550, %v623
        %v629 = vmul.f32 %v553, %v625
        %632 = vrot.lane.b32.xlu0 %v628, 112
        %v633 = vpop.permute.xlu0 %632
        %634 = vrot.lane.b32.xlu0 %v629, 112
        %v635 = vpop.permute.xlu0 %634
        %vm638 = vcmask 64512
        %v639 = vsel %vm638, %v633, 0.0
        %640 = vadd.xlane.f32.xlu0 %v639
        %v641 = vpop.xlane.xlu0 %640
        %v642 = vsel %vm638, %v635, 0.0
        %643 = vadd.xlane.f32.xlu0 %v642
        %v644 = vpop.xlane.xlu0 %643
        %v645 = vmax.f32 %v641, 0.0
        %v646 = vmax.f32 %v644, 0.0
        %v647 = vand.u32 2147483647, %v641
        %v648 = vand.u32 2147483647, %v644
        %v649 = vsub.f32 0.0, %v647
        %v650 = vsub.f32 0.0, %v648
        %v651 = vmul.f32 %v649, 1.442695
        %v652 = vpow.pop %v651
        %v653 = vmul.f32 %v650, 1.442695
        %v654 = vpow.pop %v653
        %v655 = vadd.f32 %v652, 1.0
        %v656 = vlog2.pop %v655
        %v657 = vmul.f32 %v656, 0.6931472
        %v658 = vmul.f32 -0.5, %v652
        %v659 = vadd.f32 %v658, 1.0
        %v660 = vmul.f32 %v659, %v652
        %v661 = vand.u32 2147483647, %v652
        %vm662 = vcmp.lt.f32.partialorder %v661, 0.0004427343
        %v663 = vsel %vm662, %v660, %v657
        %v664 = vadd.f32 %v654, 1.0
        %v665 = vlog2.pop %v664
        %v666 = vmul.f32 %v665, 0.6931472
        %v667 = vmul.f32 -0.5, %v654
        %v668 = vadd.f32 %v667, 1.0
        %v669 = vmul.f32 %v668, %v654
        %v670 = vand.u32 2147483647, %v654
        %vm671 = vcmp.lt.f32.partialorder %v670, 0.0004427343
        %v672 = vsel %vm671, %v669, %v666
        %v673 = vadd.f32 %v645, %v663
        %v674 = vadd.f32 %v646, %v672
        %v675 = vadd.f32 %v673, -1.0
        %v676 = vadd.f32 %v674, -1.0
        %v677 = vmul.f32 %v550, %v550
        %v678 = vmul.f32 %v553, %v553
        %681 = vrot.lane.b32.xlu0 %v677, 112
        %v682 = vpop.permute.xlu0 %681
        %683 = vrot.lane.b32.xlu0 %v678, 112
        %v684 = vpop.permute.xlu0 %683
        %v687 = vsel %vm638, %v682, 0.0
        %688 = vadd.xlane.f32.xlu0 %v687
        %v689 = vpop.xlane.xlu0 %688
        %v690 = vsel %vm638, %v684, 0.0
        %691 = vadd.xlane.f32.xlu0 %v690
        %v692 = vpop.xlane.xlu0 %691
        %v693 = vsub.f32 %v675, %v641
        %v694 = vsub.f32 %v676, %v644
        %v695 = vmul.f32 %v693, %v550
        %v696 = vmul.f32 %v694, %v553
        %v697 = vrcp.pop %v689
        %v698 = vmul.f32 %v695, %v697
        %v699 = vrcp.pop %v692
        %v700 = vmul.f32 %v696, %v699
        %703 = vrot.lane.b32.xlu0 %v698, 112
        %v704 = vpop.permute.xlu0 %703
        %705 = vrot.lane.b32.xlu0 %v700, 112
        %v706 = vpop.permute.xlu0 %705
        %v709 = vadd.f32 %v550, %v704
        %v710 = vadd.f32 %v553, %v706
        %713 = vrot.lane.b32.xlu0 %v709, 16
        %v714 = vpop.permute.xlu0 %713
        %715 = vrot.lane.b32.xlu0 %v710, 16
        %v716 = vpop.permute.xlu0 %715
        %v719 = vmul.f32 %v550, %v714
        %v720 = vmul.f32 %v553, %v716
        %723 = vrot.lane.b32.xlu0 %v719, 112
        %v724 = vpop.permute.xlu0 %723
        %725 = vrot.lane.b32.xlu0 %v720, 112
        %v726 = vpop.permute.xlu0 %725
        %v729 = vsel %vm638, %v724, 0.0
        %730 = vadd.xlane.f32.xlu0 %v729
        %v731 = vpop.xlane.xlu0 %730
        %v732 = vsel %vm638, %v726, 0.0
        %733 = vadd.xlane.f32.xlu0 %v732
        %v734 = vpop.xlane.xlu0 %733
        %735 = vrot.lane.b32.xlu0 %v628, 104
        %v736 = vpop.permute.xlu0 %735
        %737 = vrot.lane.b32.xlu0 %v629, 104
        %v738 = vpop.permute.xlu0 %737
        %v741 = vsel %vm638, %v736, 0.0
        %742 = vadd.xlane.f32.xlu0 %v741
        %v743 = vpop.xlane.xlu0 %742
        %v744 = vsel %vm638, %v738, 0.0
        %745 = vadd.xlane.f32.xlu0 %v744
        %v746 = vpop.xlane.xlu0 %745
        %v747 = vmax.f32 %v743, 0.0
        %v748 = vmax.f32 %v746, 0.0
        %v749 = vand.u32 2147483647, %v743
        %v750 = vand.u32 2147483647, %v746
        %v751 = vsub.f32 0.0, %v749
        %v752 = vsub.f32 0.0, %v750
        %v753 = vmul.f32 %v751, 1.442695
        %v754 = vpow.pop %v753
        %v755 = vmul.f32 %v752, 1.442695
        %v756 = vpow.pop %v755
        %v757 = vadd.f32 %v754, 1.0
        %v758 = vlog2.pop %v757
        %v759 = vmul.f32 %v758, 0.6931472
        %v760 = vmul.f32 -0.5, %v754
        %v761 = vadd.f32 %v760, 1.0
        %v762 = vmul.f32 %v761, %v754
        %v763 = vand.u32 2147483647, %v754
        %vm764 = vcmp.lt.f32.partialorder %v763, 0.0004427343
        %v765 = vsel %vm764, %v762, %v759
        %v766 = vadd.f32 %v756, 1.0
        %v767 = vlog2.pop %v766
        %v768 = vmul.f32 %v767, 0.6931472
        %v769 = vmul.f32 -0.5, %v756
        %v770 = vadd.f32 %v769, 1.0
        %v771 = vmul.f32 %v770, %v756
        %v772 = vand.u32 2147483647, %v756
        %vm773 = vcmp.lt.f32.partialorder %v772, 0.0004427343
        %v774 = vsel %vm773, %v771, %v768
        %v775 = vadd.f32 %v747, %v765
        %v776 = vadd.f32 %v748, %v774
        %v777 = vadd.f32 %v775, -1.0
        %v778 = vadd.f32 %v776, -1.0
        %779 = vrot.lane.b32.xlu0 %v677, 104
        %v780 = vpop.permute.xlu0 %779
        %781 = vrot.lane.b32.xlu0 %v678, 104
        %v782 = vpop.permute.xlu0 %781
        %v785 = vsel %vm638, %v780, 0.0
        %786 = vadd.xlane.f32.xlu0 %v785
        %v787 = vpop.xlane.xlu0 %786
        %v788 = vsel %vm638, %v782, 0.0
        %789 = vadd.xlane.f32.xlu0 %v788
        %v790 = vpop.xlane.xlu0 %789
        %v791 = vsub.f32 %v777, %v743
        %v792 = vsub.f32 %v778, %v746
        %v793 = vmul.f32 %v791, %v550
        %v794 = vmul.f32 %v792, %v553
        %v795 = vrcp.pop %v787
        %v796 = vmul.f32 %v793, %v795
        %v797 = vrcp.pop %v790
        %v798 = vmul.f32 %v794, %v797
        %801 = vrot.lane.b32.xlu0 %v796, 112
        %v802 = vpop.permute.xlu0 %801
        %803 = vrot.lane.b32.xlu0 %v798, 112
        %v804 = vpop.permute.xlu0 %803
        %v807 = vadd.f32 %v550, %v802
        %v808 = vadd.f32 %v553, %v804
        %811 = vrot.lane.b32.xlu0 %v807, 16
        %v812 = vpop.permute.xlu0 %811
        %813 = vrot.lane.b32.xlu0 %v808, 16
        %v814 = vpop.permute.xlu0 %813
        %v817 = vmul.f32 %v550, %v812
        %v818 = vmul.f32 %v553, %v814
        %821 = vrot.lane.b32.xlu0 %v817, 104
        %v822 = vpop.permute.xlu0 %821
        %823 = vrot.lane.b32.xlu0 %v818, 104
        %v824 = vpop.permute.xlu0 %823
        %v827 = vsel %vm638, %v822, 0.0
        %828 = vadd.xlane.f32.xlu0 %v827
        %v829 = vpop.xlane.xlu0 %828
        %v830 = vsel %vm638, %v824, 0.0
        %831 = vadd.xlane.f32.xlu0 %v830
        %v832 = vpop.xlane.xlu0 %831
        %835 = vrot.lane.b32.xlu0 %v618, 80
        %v836 = vpop.permute.xlu0 %835
        %837 = vrot.lane.b32.xlu0 %v619, 80
        %v838 = vpop.permute.xlu0 %837
        %v841 = vmul.f32 %v550, %v836
        %v842 = vmul.f32 %v553, %v838
        %845 = vrot.lane.b32.xlu0 %v841, 112
        %v846 = vpop.permute.xlu0 %845
        %847 = vrot.lane.b32.xlu0 %v842, 112
        %v848 = vpop.permute.xlu0 %847
        %v851 = vsel %vm638, %v846, 0.0
        %852 = vadd.xlane.f32.xlu0 %v851
        %v853 = vpop.xlane.xlu0 %852
        %v854 = vsel %vm638, %v848, 0.0
        %855 = vadd.xlane.f32.xlu0 %v854
        %v856 = vpop.xlane.xlu0 %855
        %v857 = vadd.f32 %v853, %v550
        %v858 = vadd.f32 %v856, %v553
        %v859 = vtanh.pop %v857
        %v860 = vtanh.pop %v858
        %862 = vset.pattern.permute.xlu0 32
        %863 = vperm.xlu0 %862, %v859
        %v864 = vpop.permute.xlu0 %863
        %867 = vset.pattern.permute.xlu0 32
        %868 = vperm.xlu0 %867, %v860
        %v869 = vpop.permute.xlu0 %868
        %v871 = vmul.f32 %v709, %v864
        %v872 = vmul.f32 %v710, %v869
        %875 = vrot.lane.b32.xlu0 %v871, 64
        %v876 = vpop.permute.xlu0 %875
        %877 = vrot.lane.b32.xlu0 %v872, 64
        %v878 = vpop.permute.xlu0 %877
        %v881 = vadd.f32 %v618, %v876
        %v882 = vadd.f32 %v619, %v878
        %v883 = vmul.f32 %v859, %v859
        %v884 = vmul.f32 %v860, %v860
        %v885 = vsub.f32 1.0, %v883
        %v886 = vsub.f32 1.0, %v884
        %v887 = vmul.f32 %v885, %v731
        %v888 = vmul.f32 %v886, %v734
        %v889 = vadd.f32 %v887, 1.0
        %v890 = vadd.f32 %v888, 1.0
        %v891 = vand.u32 2147483647, %v889
        %v892 = vand.u32 2147483647, %v890
        %v893 = vlog2.pop %v891
        %v894 = vmul.f32 %v893, 0.6931472
        %v895 = vlog2.pop %v892
        %v896 = vmul.f32 %v895, 0.6931472
        %v897 = vadd.f32 %v894, 0.0
        %v898 = vadd.f32 %v896, 0.0
        %901 = vrot.lane.b32.xlu0 %v881, 88
        %v902 = vpop.permute.xlu0 %901
        %903 = vrot.lane.b32.xlu0 %v882, 88
        %v904 = vpop.permute.xlu0 %903
        %v907 = vmul.f32 %v550, %v902
        %v908 = vmul.f32 %v553, %v904
        %911 = vrot.lane.b32.xlu0 %v907, 104
        %v912 = vpop.permute.xlu0 %911
        %913 = vrot.lane.b32.xlu0 %v908, 104
        %v914 = vpop.permute.xlu0 %913
        %v917 = vsel %vm638, %v912, 0.0
        %918 = vadd.xlane.f32.xlu0 %v917
        %v919 = vpop.xlane.xlu0 %918
        %v920 = vsel %vm638, %v914, 0.0
        %921 = vadd.xlane.f32.xlu0 %v920
        %v922 = vpop.xlane.xlu0 %921
        %v923 = vadd.f32 %v919, %v550
        %v924 = vadd.f32 %v922, %v553
        %v925 = vtanh.pop %v923
        %v926 = vtanh.pop %v924
        %928 = vset.pattern.permute.xlu0 33
        %929 = vperm.xlu0 %928, %v925
        %v930 = vpop.permute.xlu0 %929
        %933 = vset.pattern.permute.xlu0 33
        %934 = vperm.xlu0 %933, %v926
        %v935 = vpop.permute.xlu0 %934
        %v937 = vmul.f32 %v807, %v930
        %v938 = vmul.f32 %v808, %v935
        %941 = vrot.lane.b32.xlu0 %v937, 56
        %v942 = vpop.permute.xlu0 %941
        %943 = vrot.lane.b32.xlu0 %v938, 56
        %v944 = vpop.permute.xlu0 %943
        %v947 = vadd.f32 %v881, %v942
        %v948 = vadd.f32 %v882, %v944
        %v949 = vmul.f32 %v925, %v925
        %v950 = vmul.f32 %v926, %v926
        %v951 = vsub.f32 1.0, %v949
        %v952 = vsub.f32 1.0, %v950
        %v953 = vmul.f32 %v951, %v829
        %v954 = vmul.f32 %v952, %v832
        %v955 = vadd.f32 %v953, 1.0
        %v956 = vadd.f32 %v954, 1.0
        %v957 = vand.u32 2147483647, %v955
        %v958 = vand.u32 2147483647, %v956
        %v959 = vlog2.pop %v957
        %v960 = vmul.f32 %v959, 0.6931472
        %v961 = vlog2.pop %v958
        %v962 = vmul.f32 %v961, 0.6931472
        %965 = vrot.lane.b32.xlu0 %v960, 127
        %v966 = vpop.permute.xlu0 %965
        %967 = vrot.lane.b32.xlu0 %v962, 127
        %v968 = vpop.permute.xlu0 %967
        %v971 = vadd.f32 %v897, %v966
        %v972 = vadd.f32 %v898, %v968
        %v973 = vlaneseq
        %v974 = vshrl.u32 %v973, 7
        %v975 = vlaneseq
        %v976 = vand.u32 %v975, 127
        %v977 = vadd.s32 %v974, 80
        %vm978 = vcmp.eq.s32.totalorder %v976, %v977
        %v979 = vsel %vm978, 1, 0
        %v980 = vcvt.s32.f32 %v979
        %981 = vrot.lane.b32.xlu0 %v618, 64
        %v982 = vpop.permute.xlu0 %981
        %983 = vrot.lane.b32.xlu0 %v619, 64
        %v984 = vpop.permute.xlu0 %983
        %v985 = vsel %vm638, %v982, 0
        %v987 = vsel %vm638, %v984, 0
        %989 = vmatprep.subr.mxu0 0.0
        %990 = vmatpush1.msra.mxu0 %v980
        %991 = vmatprep.subr.mxu0 0.0
        %992 = vmatpush1.msra.mxu0 0.0
        %993 = vmatprep.subr.mxu0 0.0
        %994 = vmatpush1.msra.mxu0 0.0
        %995 = vmatprep.subr.mxu0 0.0
        %996 = vmatpush1.msra.mxu0 0.0
        %997 = vmatprep.subr.mxu0 0.0
        %998 = vmatpush1.msra.mxu0 0.0
        %999 = vmatprep.subr.mxu0 0.0
        %1000 = vmatpush1.msra.mxu0 0.0
        %1001 = vmatprep.subr.mxu0 0.0
        %1002 = vmatpush1.msra.mxu0 0.0
        %1003 = vmatprep.subr.mxu0 0.0
        %1004 = vmatpush1.msra.mxu0 0.0
        %1005 = vmatprep.subr.mxu0 0.0
        %1006 = vmatpush1.msra.mxu0 0.0
        %1007 = vmatprep.subr.mxu0 0.0
        %1008 = vmatpush1.msra.mxu0 0.0
        %1009 = vmatprep.subr.mxu0 0.0
        %1010 = vmatpush1.msra.mxu0 0.0
        %1011 = vmatprep.subr.mxu0 0.0
        %1012 = vmatpush1.msra.mxu0 0.0
        %1013 = vmatprep.subr.mxu0 0.0
        %1014 = vmatpush1.msra.mxu0 0.0
        %1015 = vmatprep.subr.mxu0 0.0
        %1016 = vmatpush1.msra.mxu0 0.0
        %1017 = vmatprep.subr.mxu0 0.0
        %1018 = vmatpush1.msra.mxu0 0.0
        %1019 = vmatprep.subr.mxu0 0.0
        %1020 = vmatpush1.msra.mxu0 0.0
        %1021 = vmatprep.subr.mxu0 0.0
        %1022 = vmatpush1.msra.mxu0 0.0
        %1023 = vmatprep.subr.mxu0 0.0
        %1024 = vmatpush1.msra.mxu0 0.0
        %1025 = vmatprep.subr.mxu0 0.0
        %1026 = vmatpush1.msra.mxu0 0.0
        %1027 = vmatprep.subr.mxu0 0.0
        %1028 = vmatpush1.msra.mxu0 0.0
        %1029 = vmatprep.subr.mxu0 0.0
        %1030 = vmatpush1.msra.mxu0 0.0
        %1031 = vmatprep.subr.mxu0 0.0
        %1032 = vmatpush1.msra.mxu0 0.0
        %1033 = vmatprep.subr.mxu0 0.0
        %1034 = vmatpush1.msra.mxu0 0.0
        %1035 = vmatprep.subr.mxu0 0.0
        %1036 = vmatpush1.msra.mxu0 0.0
        %1037 = vmatprep.subr.mxu0 0.0
        %1038 = vmatpush1.msra.mxu0 0.0
        %1039 = vmatprep.subr.mxu0 0.0
        %1040 = vmatpush1.msra.mxu0 0.0
        %1041 = vmatprep.subr.mxu0 0.0
        %1042 = vmatpush1.msra.mxu0 0.0
        %1043 = vmatprep.subr.mxu0 0.0
        %1044 = vmatpush1.msra.mxu0 0.0
        %1045 = vmatprep.subr.mxu0 0.0
        %1046 = vmatpush1.msra.mxu0 0.0
        %1047 = vmatprep.subr.mxu0 0.0
        %1048 = vmatpush1.msra.mxu0 0.0
        %1049 = vmatprep.subr.mxu0 0.0
        %1050 = vmatpush1.msra.mxu0 0.0
        %1051 = vmatprep.subr.mxu0 0.0
        %1052 = vmatpush1.msra.mxu0 0.0
        %1053 = vmatprep.mubr.f32.mxu0 0.0
        %1054 = vmatmul.mubr.f32.gmra.mrb[0].mxu0 %v985
        %v1055 = vpop.f32.mrb[0].mxu0
        %v1056 = vadd.f32 0.0, %v1055
        %v1057 = vpop.f32.mrb[0].mxu0
        %1058 = vmatprep.mubr.f32.mxu0 0.0
        %1059 = vmatmul.mubr.f32.gmra.mrb[0].mxu0 %v987
        %v1060 = vpop.f32.mrb[0].mxu0
        %v1061 = vadd.f32 0.0, %v1060
        %v1062 = vpop.f32.mrb[0].mxu0
        %1063 = vdwg.mxu0
        %v1064 = vadd.s32 %v974, 88
        %vm1065 = vcmp.eq.s32.totalorder %v976, %v1064
        %v1066 = vsel %vm1065, 1, 0
        %v1067 = vcvt.s32.f32 %v1066
        %1070 = vrot.lane.b32.xlu0 %v947, 64
        %v1071 = vpop.permute.xlu0 %1070
        %1072 = vrot.lane.b32.xlu0 %v948, 64
        %v1073 = vpop.permute.xlu0 %1072
        %v1074 = vsel %vm638, %v1071, 0
        %v1076 = vsel %vm638, %v1073, 0
        %1078 = vmatprep.subr.mxu0 0.0
        %1079 = vmatpush1.msra.mxu0 %v1067
        %1080 = vmatprep.subr.mxu0 0.0
        %1081 = vmatpush1.msra.mxu0 0.0
        %1082 = vmatprep.subr.mxu0 0.0
        %1083 = vmatpush1.msra.mxu0 0.0
        %1084 = vmatprep.subr.mxu0 0.0
        %1085 = vmatpush1.msra.mxu0 0.0
        %1086 = vmatprep.subr.mxu0 0.0
        %1087 = vmatpush1.msra.mxu0 0.0
        %1088 = vmatprep.subr.mxu0 0.0
        %1089 = vmatpush1.msra.mxu0 0.0
        %1090 = vmatprep.subr.mxu0 0.0
        %1091 = vmatpush1.msra.mxu0 0.0
        %1092 = vmatprep.subr.mxu0 0.0
        %1093 = vmatpush1.msra.mxu0 0.0
        %1094 = vmatprep.subr.mxu0 0.0
        %1095 = vmatpush1.msra.mxu0 0.0
        %1096 = vmatprep.subr.mxu0 0.0
        %1097 = vmatpush1.msra.mxu0 0.0
        %1098 = vmatprep.subr.mxu0 0.0
        %1099 = vmatpush1.msra.mxu0 0.0
        %1100 = vmatprep.subr.mxu0 0.0
        %1101 = vmatpush1.msra.mxu0 0.0
        %1102 = vmatprep.subr.mxu0 0.0
        %1103 = vmatpush1.msra.mxu0 0.0
        %1104 = vmatprep.subr.mxu0 0.0
        %1105 = vmatpush1.msra.mxu0 0.0
        %1106 = vmatprep.subr.mxu0 0.0
        %1107 = vmatpush1.msra.mxu0 0.0
        %1108 = vmatprep.subr.mxu0 0.0
        %1109 = vmatpush1.msra.mxu0 0.0
        %1110 = vmatprep.subr.mxu0 0.0
        %1111 = vmatpush1.msra.mxu0 0.0
        %1112 = vmatprep.subr.mxu0 0.0
        %1113 = vmatpush1.msra.mxu0 0.0
        %1114 = vmatprep.subr.mxu0 0.0
        %1115 = vmatpush1.msra.mxu0 0.0
        %1116 = vmatprep.subr.mxu0 0.0
        %1117 = vmatpush1.msra.mxu0 0.0
        %1118 = vmatprep.subr.mxu0 0.0
        %1119 = vmatpush1.msra.mxu0 0.0
        %1120 = vmatprep.subr.mxu0 0.0
        %1121 = vmatpush1.msra.mxu0 0.0
        %1122 = vmatprep.subr.mxu0 0.0
        %1123 = vmatpush1.msra.mxu0 0.0
        %1124 = vmatprep.subr.mxu0 0.0
        %1125 = vmatpush1.msra.mxu0 0.0
        %1126 = vmatprep.subr.mxu0 0.0
        %1127 = vmatpush1.msra.mxu0 0.0
        %1128 = vmatprep.subr.mxu0 0.0
        %1129 = vmatpush1.msra.mxu0 0.0
        %1130 = vmatprep.subr.mxu0 0.0
        %1131 = vmatpush1.msra.mxu0 0.0
        %1132 = vmatprep.subr.mxu0 0.0
        %1133 = vmatpush1.msra.mxu0 0.0
        %1134 = vmatprep.subr.mxu0 0.0
        %1135 = vmatpush1.msra.mxu0 0.0
        %1136 = vmatprep.subr.mxu0 0.0
        %1137 = vmatpush1.msra.mxu0 0.0
        %1138 = vmatprep.subr.mxu0 0.0
        %1139 = vmatpush1.msra.mxu0 0.0
        %1140 = vmatprep.subr.mxu0 0.0
        %1141 = vmatpush1.msra.mxu0 0.0
        %1142 = vmatprep.mubr.f32.mxu0 0.0
        %1143 = vmatmul.mubr.f32.gmra.mrb[0].mxu0 %v1074
        %v1144 = vpop.f32.mrb[0].mxu0
        %v1145 = vadd.f32 0.0, %v1144
        %v1146 = vpop.f32.mrb[0].mxu0
        %1147 = vmatprep.mubr.f32.mxu0 0.0
        %1148 = vmatmul.mubr.f32.gmra.mrb[0].mxu0 %v1076
        %v1149 = vpop.f32.mrb[0].mxu0
        %v1150 = vadd.f32 0.0, %v1149
        %v1151 = vpop.f32.mrb[0].mxu0
        %1152 = vdwg.mxu0
        %v1153 = vpack.c.bf16 %v1150, %v1145
        %v1154 = vld [vmem:[#allocation5 + $0xc0] sm:$0xf]
        %v1155 = vld [vmem:[#allocation5 + $0xc4] sm:$0xf]
        %v1156 = vld [vmem:[#allocation5 + $0xc8] sm:$0xf]
        %v1157 = vld [vmem:[#allocation5 + $0xcc] sm:$0xf]
        %v1158 = vld [vmem:[#allocation5 + $0xd0] sm:$0xf]
        %v1159 = vld [vmem:[#allocation5 + $0xd4] sm:$0xf]
        %v1160 = vld [vmem:[#allocation5 + $0xd8] sm:$0xf]
        %v1161 = vld [vmem:[#allocation5 + $0xdc] sm:$0xf]
        %v1162 = vld [vmem:[#allocation5 + $0xe0] sm:$0xf]
        %v1163 = vld [vmem:[#allocation5 + $0xe4] sm:$0xf]
        %v1164 = vld [vmem:[#allocation5 + $0xe8] sm:$0xf]
        %v1165 = vld [vmem:[#allocation5 + $0xec] sm:$0xf]
        %v1166 = vld [vmem:[#allocation5 + $0xf0] sm:$0xf]
        %v1167 = vld [vmem:[#allocation5 + $0xf4] sm:$0xf]
        %v1168 = vld [vmem:[#allocation5 + $0xf8] sm:$0xf]
        %v1169 = vld [vmem:[#allocation5 + $0xfc] sm:$0xf]
        %v1170 = vlaneseq
        %v1171 = vshrl.u32 %v1170, 7
        %v1172 = vsub.s32 3, %v1171
        %v1173 = vrot.slane %v221, %v1172
        %v1190 = vunpack.c.l.b16 %v1154
        %v1191 = vunpack.c.l.b16 %v1155
        %v1192 = vunpack.c.l.b16 %v1156
        %v1193 = vunpack.c.l.b16 %v1157
        %v1194 = vunpack.c.l.b16 %v1158
        %v1195 = vunpack.c.l.b16 %v1159
        %v1196 = vunpack.c.l.b16 %v1160
        %v1197 = vunpack.c.l.b16 %v1161
        %v1198 = vunpack.c.l.b16 %v1162
        %v1199 = vunpack.c.l.b16 %v1163
        %v1200 = vunpack.c.l.b16 %v1164
        %v1201 = vunpack.c.l.b16 %v1165
        %v1202 = vunpack.c.l.b16 %v1166
        %v1203 = vunpack.c.l.b16 %v1167
        %v1204 = vunpack.c.l.b16 %v1168
        %v1205 = vunpack.c.l.b16 %v1169
        %v1206 = vpack.c.b16 %v1191, %v1190
        %v1207 = vpack.c.b16 %v1193, %v1192
        %v1208 = vpack.c.b16 %v1195, %v1194
        %v1209 = vpack.c.b16 %v1197, %v1196
        %v1210 = vpack.c.b16 %v1199, %v1198
        %v1211 = vpack.c.b16 %v1201, %v1200
        %v1212 = vpack.c.b16 %v1203, %v1202
        %v1213 = vpack.c.b16 %v1205, %v1204
        %1222 = vmatprep.subr.bf16.mxu0 0
        %1223 = vmatpush1.bf16.msra.mxu0 %v1206
        %1224 = vmatprep.subr.bf16.mxu0 0
        %1225 = vmatpush1.bf16.msra.mxu0 %v1207
        %1226 = vmatprep.subr.bf16.mxu0 0
        %1227 = vmatpush1.bf16.msra.mxu0 %v1208
        %1228 = vmatprep.subr.bf16.mxu0 0
        %1229 = vmatpush1.bf16.msra.mxu0 %v1209
        %1230 = vmatprep.subr.bf16.mxu0 0
        %1231 = vmatpush1.bf16.msra.mxu0 %v1210
        %1232 = vmatprep.subr.bf16.mxu0 0
        %1233 = vmatpush1.bf16.msra.mxu0 %v1211
        %1234 = vmatprep.subr.bf16.mxu0 0
        %1235 = vmatpush1.bf16.msra.mxu0 %v1212
        %1236 = vmatprep.subr.bf16.mxu0 0
        %1237 = vmatpush1.bf16.msra.mxu0 %v1213
        %1238 = vmatprep.subr.bf16.mxu0 0
        %1239 = vmatpush1.bf16.msra.mxu0 0
        %1240 = vmatprep.subr.bf16.mxu0 0
        %1241 = vmatpush1.bf16.msra.mxu0 0
        %1242 = vmatprep.subr.bf16.mxu0 0
        %1243 = vmatpush1.bf16.msra.mxu0 0
        %1244 = vmatprep.subr.bf16.mxu0 0
        %1245 = vmatpush1.bf16.msra.mxu0 0
        %1246 = vmatprep.subr.bf16.mxu0 0
        %1247 = vmatpush1.bf16.msra.mxu0 0
        %1248 = vmatprep.subr.bf16.mxu0 0
        %1249 = vmatpush1.bf16.msra.mxu0 0
        %1250 = vmatprep.subr.bf16.mxu0 0
        %1251 = vmatpush1.bf16.msra.mxu0 0
        %1252 = vmatprep.subr.bf16.mxu0 0
        %1253 = vmatpush1.bf16.msra.mxu0 0
        %1254 = vmatprep.mubr.bf16.mxu0 0
        %1255 = vmatmul.mubr.bf16.gmra.mrb[0].mxu0 %v1153
        %v1256 = vpop.f32.mrb[0].mxu0
        %v1257 = vadd.f32 %v1173, %v1256
        %v1258 = vpop.f32.mrb[0].mxu0
        %v1259 = vpop.f32.mrb[0].mxu0
        %v1260 = vadd.f32 %v1173, %v1259
        %v1261 = vpop.f32.mrb[0].mxu0
        %1262 = vdwg.mxu0
        %v1263 = vmax.f32 %v1257, 0.0
        %v1264 = vmax.f32 %v1260, 0.0
        %v1265 = vpack.c.bf16 %v1264, %v1263
        %v1266 = vld [vmem:[#allocation5 + $0x100] sm:$0xf]
        %v1267 = vld [vmem:[#allocation5 + $0x104] sm:$0xf]
        %v1268 = vld [vmem:[#allocation5 + $0x108] sm:$0xf]
        %v1269 = vld [vmem:[#allocation5 + $0x10c] sm:$0xf]
        %v1270 = vld [vmem:[#allocation5 + $0x110] sm:$0xf]
        %v1271 = vld [vmem:[#allocation5 + $0x114] sm:$0xf]
        %v1272 = vld [vmem:[#allocation5 + $0x118] sm:$0xf]
        %v1273 = vld [vmem:[#allocation5 + $0x11c] sm:$0xf]
        %v1274 = vld [vmem:[#allocation5 + $0x120] sm:$0xf]
        %v1275 = vld [vmem:[#allocation5 + $0x124] sm:$0xf]
        %v1276 = vld [vmem:[#allocation5 + $0x128] sm:$0xf]
        %v1277 = vld [vmem:[#allocation5 + $0x12c] sm:$0xf]
        %v1278 = vld [vmem:[#allocation5 + $0x130] sm:$0xf]
        %v1279 = vld [vmem:[#allocation5 + $0x134] sm:$0xf]
        %v1280 = vld [vmem:[#allocation5 + $0x138] sm:$0xf]
        %v1281 = vld [vmem:[#allocation5 + $0x13c] sm:$0xf]
        %v1282 = vlaneseq
        %v1283 = vshrl.u32 %v1282, 7
        %v1284 = vsub.s32 4, %v1283
        %v1285 = vrot.slane %v221, %v1284
        %v1302 = vunpack.c.l.b16 %v1266
        %v1303 = vunpack.c.l.b16 %v1267
        %v1304 = vunpack.c.l.b16 %v1268
        %v1305 = vunpack.c.l.b16 %v1269
        %v1306 = vunpack.c.l.b16 %v1270
        %v1307 = vunpack.c.l.b16 %v1271
        %v1308 = vunpack.c.l.b16 %v1272
        %v1309 = vunpack.c.l.b16 %v1273
        %v1310 = vunpack.c.l.b16 %v1274
        %v1311 = vunpack.c.l.b16 %v1275
        %v1312 = vunpack.c.l.b16 %v1276
        %v1313 = vunpack.c.l.b16 %v1277
        %v1314 = vunpack.c.l.b16 %v1278
        %v1315 = vunpack.c.l.b16 %v1279
        %v1316 = vunpack.c.l.b16 %v1280
        %v1317 = vunpack.c.l.b16 %v1281
        %v1318 = vpack.c.b16 %v1303, %v1302
        %v1319 = vpack.c.b16 %v1305, %v1304
        %v1320 = vpack.c.b16 %v1307, %v1306
        %v1321 = vpack.c.b16 %v1309, %v1308
        %v1322 = vpack.c.b16 %v1311, %v1310
        %v1323 = vpack.c.b16 %v1313, %v1312
        %v1324 = vpack.c.b16 %v1315, %v1314
        %v1325 = vpack.c.b16 %v1317, %v1316
        %1334 = vmatprep.subr.bf16.mxu0 0
        %1335 = vmatpush1.bf16.msra.mxu0 %v1318
        %1336 = vmatprep.subr.bf16.mxu0 0
        %1337 = vmatpush1.bf16.msra.mxu0 %v1319
        %1338 = vmatprep.subr.bf16.mxu0 0
        %1339 = vmatpush1.bf16.msra.mxu0 %v1320
        %1340 = vmatprep.subr.bf16.mxu0 0
        %1341 = vmatpush1.bf16.msra.mxu0 %v1321
        %1342 = vmatprep.subr.bf16.mxu0 0
        %1343 = vmatpush1.bf16.msra.mxu0 %v1322
        %1344 = vmatprep.subr.bf16.mxu0 0
        %1345 = vmatpush1.bf16.msra.mxu0 %v1323
        %1346 = vmatprep.subr.bf16.mxu0 0
        %1347 = vmatpush1.bf16.msra.mxu0 %v1324
        %1348 = vmatprep.subr.bf16.mxu0 0
        %1349 = vmatpush1.bf16.msra.mxu0 %v1325
        %1350 = vmatprep.subr.bf16.mxu0 0
        %1351 = vmatpush1.bf16.msra.mxu0 0
        %1352 = vmatprep.subr.bf16.mxu0 0
        %1353 = vmatpush1.bf16.msra.mxu0 0
        %1354 = vmatprep.subr.bf16.mxu0 0
        %1355 = vmatpush1.bf16.msra.mxu0 0
        %1356 = vmatprep.subr.bf16.mxu0 0
        %1357 = vmatpush1.bf16.msra.mxu0 0
        %1358 = vmatprep.subr.bf16.mxu0 0
        %1359 = vmatpush1.bf16.msra.mxu0 0
        %1360 = vmatprep.subr.bf16.mxu0 0
        %1361 = vmatpush1.bf16.msra.mxu0 0
        %1362 = vmatprep.subr.bf16.mxu0 0
        %1363 = vmatpush1.bf16.msra.mxu0 0
        %1364 = vmatprep.subr.bf16.mxu0 0
        %1365 = vmatpush1.bf16.msra.mxu0 0
        %1366 = vmatprep.mubr.bf16.mxu0 0
        %1367 = vmatmul.mubr.bf16.gmra.mrb[0].mxu0 %v1265
        %v1368 = vpop.f32.mrb[0].mxu0
        %v1369 = vadd.f32 %v1285, %v1368
        %v1370 = vpop.f32.mrb[0].mxu0
        %v1371 = vpop.f32.mrb[0].mxu0
        %v1372 = vadd.f32 %v1285, %v1371
        %v1373 = vpop.f32.mrb[0].mxu0
        %1374 = vdwg.mxu0
        %v1375 = vmax.f32 %v1369, 0.0
        %v1376 = vmax.f32 %v1372, 0.0
        %v1377 = vpack.c.bf16 %v1376, %v1375
        %v1378 = vld [vmem:[#allocation5 + $0x140] sm:$0xf]
        %v1379 = vld [vmem:[#allocation5 + $0x144] sm:$0xf]
        %v1380 = vld [vmem:[#allocation5 + $0x148] sm:$0xf]
        %v1381 = vld [vmem:[#allocation5 + $0x14c] sm:$0xf]
        %v1382 = vld [vmem:[#allocation5 + $0x150] sm:$0xf]
        %v1383 = vld [vmem:[#allocation5 + $0x154] sm:$0xf]
        %v1384 = vld [vmem:[#allocation5 + $0x158] sm:$0xf]
        %v1385 = vld [vmem:[#allocation5 + $0x15c] sm:$0xf]
        %v1386 = vld [vmem:[#allocation5 + $0x160] sm:$0xf]
        %v1387 = vld [vmem:[#allocation5 + $0x164] sm:$0xf]
        %v1388 = vld [vmem:[#allocation5 + $0x168] sm:$0xf]
        %v1389 = vld [vmem:[#allocation5 + $0x16c] sm:$0xf]
        %v1390 = vld [vmem:[#allocation5 + $0x170] sm:$0xf]
        %v1391 = vld [vmem:[#allocation5 + $0x174] sm:$0xf]
        %v1392 = vld [vmem:[#allocation5 + $0x178] sm:$0xf]
        %v1393 = vld [vmem:[#allocation5 + $0x17c] sm:$0xf]
        %v1394 = vlaneseq
        %v1395 = vshrl.u32 %v1394, 7
        %v1396 = vsub.s32 5, %v1395
        %v1397 = vrot.slane %v221, %v1396
        %v1414 = vunpack.c.l.b16 %v1378
        %v1415 = vunpack.c.l.b16 %v1379
        %v1416 = vunpack.c.l.b16 %v1380
        %v1417 = vunpack.c.l.b16 %v1381
        %v1418 = vunpack.c.l.b16 %v1382
        %v1419 = vunpack.c.l.b16 %v1383
        %v1420 = vunpack.c.l.b16 %v1384
        %v1421 = vunpack.c.l.b16 %v1385
        %v1422 = vunpack.c.l.b16 %v1386
        %v1423 = vunpack.c.l.b16 %v1387
        %v1424 = vunpack.c.l.b16 %v1388
        %v1425 = vunpack.c.l.b16 %v1389
        %v1426 = vunpack.c.l.b16 %v1390
        %v1427 = vunpack.c.l.b16 %v1391
        %v1428 = vunpack.c.l.b16 %v1392
        %v1429 = vunpack.c.l.b16 %v1393
        %v1430 = vpack.c.b16 %v1415, %v1414
        %v1431 = vpack.c.b16 %v1417, %v1416
        %v1432 = vpack.c.b16 %v1419, %v1418
        %v1433 = vpack.c.b16 %v1421, %v1420
        %v1434 = vpack.c.b16 %v1423, %v1422
        %v1435 = vpack.c.b16 %v1425, %v1424
        %v1436 = vpack.c.b16 %v1427, %v1426
        %v1437 = vpack.c.b16 %v1429, %v1428
        %1446 = vmatprep.subr.bf16.mxu0 0
        %1447 = vmatpush1.bf16.msra.mxu0 %v1430
        %1448 = vmatprep.subr.bf16.mxu0 0
        %1449 = vmatpush1.bf16.msra.mxu0 %v1431
        %1450 = vmatprep.subr.bf16.mxu0 0
        %1451 = vmatpush1.bf16.msra.mxu0 %v1432
        %1452 = vmatprep.subr.bf16.mxu0 0
        %1453 = vmatpush1.bf16.msra.mxu0 %v1433
        %1454 = vmatprep.subr.bf16.mxu0 0
        %1455 = vmatpush1.bf16.msra.mxu0 %v1434
        %1456 = vmatprep.subr.bf16.mxu0 0
        %1457 = vmatpush1.bf16.msra.mxu0 %v1435
        %1458 = vmatprep.subr.bf16.mxu0 0
        %1459 = vmatpush1.bf16.msra.mxu0 %v1436
        %1460 = vmatprep.subr.bf16.mxu0 0
        %1461 = vmatpush1.bf16.msra.mxu0 %v1437
        %1462 = vmatprep.subr.bf16.mxu0 0
        %1463 = vmatpush1.bf16.msra.mxu0 0
        %1464 = vmatprep.subr.bf16.mxu0 0
        %1465 = vmatpush1.bf16.msra.mxu0 0
        %1466 = vmatprep.subr.bf16.mxu0 0
        %1467 = vmatpush1.bf16.msra.mxu0 0
        %1468 = vmatprep.subr.bf16.mxu0 0
        %1469 = vmatpush1.bf16.msra.mxu0 0
        %1470 = vmatprep.subr.bf16.mxu0 0
        %1471 = vmatpush1.bf16.msra.mxu0 0
        %1472 = vmatprep.subr.bf16.mxu0 0
        %1473 = vmatpush1.bf16.msra.mxu0 0
        %1474 = vmatprep.subr.bf16.mxu0 0
        %1475 = vmatpush1.bf16.msra.mxu0 0
        %1476 = vmatprep.subr.bf16.mxu0 0
        %1477 = vmatpush1.bf16.msra.mxu0 0
        %1478 = vmatprep.mubr.bf16.mxu0 0
        %1479 = vmatmul.mubr.bf16.gmra.mrb[0].mxu0 %v1377
        %v1480 = vpop.f32.mrb[0].mxu0
        %v1481 = vadd.f32 %v1397, %v1480
        %v1482 = vpop.f32.mrb[0].mxu0
        %v1483 = vpop.f32.mrb[0].mxu0
        %v1484 = vadd.f32 %v1397, %v1483
        %v1485 = vpop.f32.mrb[0].mxu0
        %1486 = vdwg.mxu0
        %vm1487 = vcmp.ge.s32.totalorder %v976, 64
        %vm1488 = vcmp.lt.s32.totalorder %v976, 72
        %vm1489 = vmand %vm1487, %vm1488
        %vm1490 = vcmp.ge.s32.totalorder %v976, 72
        %vm1491 = vcmp.lt.s32.totalorder %v976, 80
        %vm1492 = vmand %vm1490, %vm1491
        %v1493 = vsel %vm1492, %v584, 0.0
        %v1494 = vsel %vm1492, %v585, 0.0
        %v1495 = vsel %vm1489, %v550, %v1493
        %v1496 = vsel %vm1489, %v553, %v1494
        %vm1497 = vcmp.ge.s32.totalorder %v976, 96
        %1499 = vset.pattern.permute.xlu0 32
        %1500 = vperm.xlu0 %1499, %v971
        %v1501 = vpop.permute.xlu0 %1500
        %1504 = vset.pattern.permute.xlu0 32
        %1505 = vperm.xlu0 %1504, %v972
        %v1506 = vpop.permute.xlu0 %1505
        %v1508 = vsel %vm1497, %v1501, 0.0
        %v1509 = vsel %vm1497, %v1506, 0.0
        %v1510 = vadd.f32 %v1481, %v1495
        %v1511 = vadd.f32 %v1484, %v1496
        %v1512 = vadd.f32 %v1510, %v1056
        %v1513 = vadd.f32 %v1511, %v1061
        %v1514 = vadd.f32 %v1512, %v1145
        %v1515 = vadd.f32 %v1513, %v1150
        %v1516 = vadd.f32 %v1514, %v1508
        %v1517 = vadd.f32 %v1515, %v1509
        %1518 = vst [vmem:[%s215] sm:$0xff] %v1516
        %1519 = vst [vmem:[%s215 + $0x8] sm:$0xff] %v1517
        %s1520 = sand.u32 %s97, 1
        %s1521 = scalar_lea.sflag [#allocation4], %s1520
        %s1522 = sand.u32 %s97, 1
        %s1523 = smul.addr %s1522, 16
        %s1524 = scalar_lea.vmem [#allocation8], %s1523
        // Predicated region
        $region45: #{tpu_custom_call.1} parent=31 // pred_check
          %p1525 = pneg %p107
        $region46: #{tpu_custom_call.1} parent=31 // pred_check_branch
          %1527 = sbr.rel (%p1525) target = $region48
        $region47: #{tpu_custom_call.1} parent=31 // pred_region
          %s1528 = smul.u32 2, %s21
          %s1530 = ssub.s32 256, 256
          %1531 = vsyncadd %s1521, %s1530
          %s1532 = smul.addr %s1528, 128
          %s1533 = scalar_lea.hbm %s3, %s1532
          %s1534 = sshll.u32 %s1524, 4
          %s1535 = int_to_ptr.vmem [resolvable:$true] %s1534
          %1540 = dma.vmem_to_hbm [thread:$0]  %s1535, 256, %s1533, %s1521, 128, 128, 8
        $region48: #{tpu_custom_call.1} parent=31 // pred_fallthru
          _
      $region32: #{tpu_custom_call.1} parent=5 // pred_fallthru
        _
      %p1541 = scmp.le.s32.totalorder 2, %s16
      // Predicated region
      $region49: #{tpu_custom_call.1} parent=5 // pred_check
        %p1542 = pneg %p1541
      $region50: #{tpu_custom_call.1} parent=5 // pred_check_branch
        %1544 = sbr.rel (%p1542) target = $region52
      $region51: #{tpu_custom_call.1} parent=5 // pred_region
        %s1545 = ssub.s32 %s16, 2
        // Predicated region
        $region53: #{tpu_custom_call.1} parent=51 // pred_check
          %p1546 = pneg %p113
        $region54: #{tpu_custom_call.1} parent=51 // pred_check_branch
          %1548 = sbr.rel (%p1546) target = $region56
        $region55: #{tpu_custom_call.1} parent=51 // pred_region
          %s1549 = sand.u32 %s98, 1
          %s1550 = scalar_lea.sflag [#allocation4], %s1549
          %s1551 = sand.u32 %s98, 1
          %s1552 = smul.addr %s1551, 16
          %s1553 = scalar_lea.vmem [#allocation8], %s1552
          %1554 = dma.done %s1550, 256
        $region56: #{tpu_custom_call.1} parent=51 // pred_fallthru
          _
      $region52: #{tpu_custom_call.1} parent=5 // pred_fallthru
        _
    $region6: #{tpu_custom_call.1} parent=1 // loop_footer
      %s20 = sadd.s32 1, %s16
    $region7: #{tpu_custom_call.1} parent=1 // loop_footer_branch
      %15 = sbr.rel target = $region3
    $region8: #{tpu_custom_call.1} parent=1 // loop_exit
      _
    %1555 = vsyncpa [#allocation3], 1
    %s1556 = scalar_lea.sflag [#allocation3], 1
    %1557 = vsyncpa %s1556, 1
    %1558 = vsyncpa [#allocation6], 1
    %1559 = vsyncpa [#allocation4], 1
    %s1560 = scalar_lea.sflag [#allocation4], 1
    %1561 = vsyncpa %s1560, 1

</llo_original>
